<compile_context>
chip_gen: v7x
topology: tpu7x:2x2x1
jax: 0.10.0
libtpu: 0.0.40
codegen_flags: <defaults>
</compile_context>

<pallas_src>
import functools
import math

import jax
import jax.numpy as jnp
from jax import lax
from jax.experimental import pallas as pl
from jax.experimental.pallas import tpu as pltpu


# ----------------------------------------------------------------------------
# Kernel 1: depthwise masked conv1d (k=3, s=1, p=1) + channel LayerNorm + 1x1
# projection for q / k / v.  Reads the (B, C, T) input directly (transpose
# fused in-kernel) and writes channel-last (B, T, C) bf16 q/k/v.
#
# One-step-delayed pipeline: grid step c fetches x tile c (each tile DMA'd
# once); the conv/LN/proj for tile c-1 is computed from a carried VMEM copy,
# with the left halo row carried in a (1, C) scratch and the right halo row
# taken from the freshly fetched tile.  Grid has n_t + 1 steps per batch.
# ----------------------------------------------------------------------------
def _qkv_prep_kernel(x_ref, m_ref, cst_ref, w_ref,
                     q_out, k_out, v_out,
                     xprev_ref, lrow_ref, *, t1, n_t, eps):
    c = pl.program_id(1)

    # (C, t1) NCT block -> (t1, C) channel-last; XLU transpose, no HBM traffic.
    x_cur = jnp.transpose(x_ref[0].astype(jnp.float32))

    @pl.when(c > 0)
    def _compute():                              # compute tile c - 1
        cst = cst_ref[...]                       # (18, C) packed constants
        prev = xprev_ref[...]                    # (t1, C)  x tile c-1
        left = lrow_ref[...]                     # (1, C)   last row of tile c-2 (or 0)
        right = jnp.where(c == n_t,
                          jnp.zeros((1, prev.shape[1]), prev.dtype),
                          x_cur[0:1, :])         # first row of tile c (or conv pad)
        m = m_ref[0]                             # (t1, 1)  mask rows of tile c-1

        xcat = jnp.concatenate([left, prev, right], axis=0)   # (t1 + 2, C)
        r0 = xcat[0:t1]
        r1 = xcat[1:t1 + 1]
        r2 = xcat[2:t1 + 2]

        def branch(dw, g, b_ln, w_idx, b_proj, out_ref):
            # depthwise conv1d (cross-correlation), k=3, s=1, p=1; mask output
            conv = dw[0:1, :] * r0 + dw[1:2, :] * r1 + dw[2:3, :] * r2
            conv = conv * m
            # LayerNorm over channels (biased variance) + per-channel affine
            mu = jnp.mean(conv, axis=1, keepdims=True)
            cen = conv - mu
            var = jnp.mean(cen * cen, axis=1, keepdims=True)
            ln = cen * lax.rsqrt(var + eps) * g + b_ln
            # 1x1 conv == channel matmul; bf16 MXU inputs, f32 accumulation
            proj = jnp.dot(ln.astype(jnp.bfloat16), w_ref[w_idx],
                           preferred_element_type=jnp.float32) + b_proj
            out_ref[0] = proj.astype(jnp.bfloat16)

        branch(cst[0:3], cst[9:10], cst[10:11], 0, cst[15:16], q_out)
        branch(cst[3:6], cst[11:12], cst[12:13], 1, cst[16:17], k_out)
        branch(cst[6:9], cst[13:14], cst[14:15], 2, cst[17:18], v_out)

    # carry: left halo row for the next step, then the freshly fetched tile
    lrow_ref[...] = jnp.where(c == 0,
                              jnp.zeros((1, x_cur.shape[1]), jnp.float32),
                              xprev_ref[t1 - 1:t1, :])
    xprev_ref[...] = x_cur


# ----------------------------------------------------------------------------
# Kernel 2: banded (sliding-window) attention + fused output projection + mask,
# storing directly in (B, C, T) layout (output transpose fused in-kernel).
# The kv window for query tile c is the two consecutive tiles (c, c+1) of the
# w-front-padded k/v, kept as two halves (no concatenates).
# ----------------------------------------------------------------------------
def _band_attn_proj_kernel(lens_ref,
                           q_ref, k0_ref, k1_ref, v0_ref, v1_ref,
                           kb0_ref, kb1_ref, mrow_ref, wp_ref, bp_ref,
                           o_ref, ctx_ref, *, n_head, head_dim, w, seq_len, tq):
    b = pl.program_id(0)
    c = pl.program_id(1)
    tile_valid = c * tq < lens_ref[b]

    @pl.when(jnp.logical_not(tile_valid))
    def _skip():                                 # tile fully past valid length
        o_ref[...] = jnp.zeros(o_ref.shape, o_ref.dtype)

    @pl.when(tile_valid)
    def _compute():
        q = q_ref[0]                             # (tq, C) bf16, scale folded in
        k0 = k0_ref[0]
        k1 = k1_ref[0]
        v0 = v0_ref[0]
        v1 = v1_ref[0]
        b0 = kb0_ref[0, 0]                       # (1, tq) f32: 0 / -1e4 at masked kv
        b1 = kb1_ref[0, 0]
        m_row = mrow_ref[0]                      # (tq, 1) f32 query mask

        # band + range validity, hoisted out of the head loop.
        # window column j (half 0: j in [0,tq), half 1: j in [tq,2tq)) maps to
        # global kv index g = c*tq + j - w (w front pad of k/v).
        ii = lax.broadcasted_iota(jnp.int32, (tq, tq), 0)
        jj = lax.broadcasted_iota(jnp.int32, (tq, tq), 1)
        g0 = jj + (c * tq - w)
        in0 = (jj >= ii) & (jj <= ii + 2 * w) & (g0 >= 0) & (g0 < seq_len)
        jj1 = jj + tq
        g1 = g0 + tq
        in1 = (jj1 >= ii) & (jj1 <= ii + 2 * w) & (g1 >= 0) & (g1 < seq_len)
        bias0 = jnp.where(in0, b0, -jnp.inf)     # (tq, tq) f32
        bias1 = jnp.where(in1, b1, -jnp.inf)

        for h in range(n_head):                  # heads = static lane slices
            sl = slice(h * head_dim, (h + 1) * head_dim)
            q_h = q[:, sl]
            s0 = lax.dot_general(q_h, k0[:, sl], (((1,), (1,)), ((), ())),
                                 preferred_element_type=jnp.float32) + bias0
            s1 = lax.dot_general(q_h, k1[:, sl], (((1,), (1,)), ((), ())),
                                 preferred_element_type=jnp.float32) + bias1
            s_max = jnp.maximum(jnp.max(s0, axis=-1, keepdims=True),
                                jnp.max(s1, axis=-1, keepdims=True))
            p0 = jnp.exp(s0 - s_max)
            p1 = jnp.exp(s1 - s_max)
            denom = (jnp.sum(p0, axis=-1, keepdims=True) +
                     jnp.sum(p1, axis=-1, keepdims=True))
            ctx_h = (jnp.dot(p0.astype(jnp.bfloat16), v0[:, sl],
                             preferred_element_type=jnp.float32) +
                     jnp.dot(p1.astype(jnp.bfloat16), v1[:, sl],
                             preferred_element_type=jnp.float32))
            # deferred softmax normalization on the small (tq, hd) context
            ctx_ref[:, sl] = ctx_h * pl.reciprocal(denom, approx=True)

        # fused 1x1 output projection + qx_mask, then NCT store (fused transpose)
        out = jnp.dot(ctx_ref[...].astype(jnp.bfloat16), wp_ref[...],
                      preferred_element_type=jnp.float32) + bp_ref[...]
        out = out * m_row
        o_ref[0] = jnp.transpose(out)            # (C, tq) lane-dense for tq>=128


# ----------------------------------------------------------------------------
# Tile selection (constraint-safe: tiles are multiples of 128 or the full T)
# ----------------------------------------------------------------------------
def _pick_conv_tile(T):
    c128 = [t for t in range(128, min(T, 512) + 1, 128) if T % t == 0]
    return max(c128) if c128 else T


def _pick_attn_tile(T, w):
    need = 2 * w
    c128 = [t for t in range(128, T + 1, 128) if T % t == 0 and t >= need]
    return min(c128) if c128 else T


# ----------------------------------------------------------------------------
# Wrapper
# ----------------------------------------------------------------------------
def local_masked_mhca(x, mask, params, *, n_head, window_size):
    B, C, T = x.shape
    assert C % n_head == 0 and C % 8 == 0
    hd = C // n_head
    w = window_size // 2
    assert window_size > 1 and T % (2 * w) == 0 and T >= 2 * w
    scale = 1.0 / math.sqrt(hd)

    t1 = _pick_conv_tile(T)       # kernel-1 streaming tile (large)
    n_t = T // t1
    tq = _pick_attn_tile(T, w)    # attention tile, window-aware
    nq = T // tq
    assert tq % 128 == 0 or T % 16 == 0, "need T % 16 == 0 for small-T fallback tiles"

    x = x.astype(jnp.float32)
    mask_t = mask.reshape(B, T)
    m_row = mask_t.astype(jnp.float32).reshape(B, T, 1)          # (B, T, 1)

    # pack small constants: 3x depthwise taps, 6x LN affines, 3x proj biases
    consts = jnp.concatenate([
        params["dw_q"], params["dw_k"], params["dw_v"],          # rows 0..8
        params["ln_q_g"], params["ln_q_b"],
        params["ln_k_g"], params["ln_k_b"],
        params["ln_v_g"], params["ln_v_b"],                      # rows 9..14
        params["bq"] * scale, params["bk"], params["bv"],        # rows 15..17
    ], axis=0).astype(jnp.float32)                               # (18, C)
    # softmax scale folded into the query projection; bf16 MXU weights
    w_qkv = jnp.stack([params["wq_t"] * scale, params["wk_t"], params["wv_t"]],
                      axis=0).astype(jnp.bfloat16)               # (3, C, C)
    wp = params["wp_t"].astype(jnp.bfloat16)
    bp = params["bp"].astype(jnp.float32)

    # ---- kernel 1: q / k / v preparation (NCT read, NTC bf16 write) ----
    q, k, v = pl.pallas_call(
        functools.partial(_qkv_prep_kernel, t1=t1, n_t=n_t, eps=1e-5),
        grid=(B, n_t + 1),
        in_specs=[
            pl.BlockSpec((1, C, t1), lambda b, c: (b, 0, jnp.minimum(c, n_t - 1))),
            pl.BlockSpec((1, t1, 1), lambda b, c: (b, jnp.maximum(c - 1, 0), 0)),
            pl.BlockSpec((18, C), lambda b, c: (0, 0)),
            pl.BlockSpec((3, C, C), lambda b, c: (0, 0, 0)),
        ],
        out_specs=[
            pl.BlockSpec((1, t1, C), lambda b, c: (b, jnp.maximum(c - 1, 0), 0)),
            pl.BlockSpec((1, t1, C), lambda b, c: (b, jnp.maximum(c - 1, 0), 0)),
            pl.BlockSpec((1, t1, C), lambda b, c: (b, jnp.maximum(c - 1, 0), 0)),
        ],
        out_shape=[jax.ShapeDtypeStruct((B, T, C), jnp.bfloat16)] * 3,
        scratch_shapes=[pltpu.VMEM((t1, C), jnp.float32),
                        pltpu.VMEM((1, C), jnp.float32)],
        compiler_params=pltpu.CompilerParams(
            dimension_semantics=("parallel", "arbitrary"),
            vmem_limit_bytes=32 * 1024 * 1024),
    )(x, m_row, consts, w_qkv)

    # pad kv by (w front, tq-w back) so tile c's window lives in tiles c, c+1
    k_pad = jnp.pad(k, ((0, 0), (w, tq - w), (0, 0)))            # (B, T+tq, C)
    v_pad = jnp.pad(v, ((0, 0), (w, tq - w), (0, 0)))

    kv_bias = jnp.where(mask_t, 0.0, -10000.0).astype(jnp.float32)
    kv_bias = jnp.pad(kv_bias, ((0, 0), (w, tq - w)), constant_values=-10000.0)
    kv_bias = kv_bias.reshape(B, nq + 1, 1, tq)

    # last valid index + 1 per batch element (skip fully padded query tiles)
    any_valid = jnp.any(mask_t, axis=1)
    last = T - 1 - jnp.argmax(mask_t[:, ::-1].astype(jnp.int32), axis=1)
    lens = jnp.where(any_valid, last + 1, 0).astype(jnp.int32)   # (B,)

    def clamp(c, valid_len):
        # clamp block index to the last in-range tile so skipped (fully padded)
        # tiles reuse the resident block instead of issuing fresh DMAs
        last_blk = jnp.maximum((valid_len + tq - 1) // tq - 1, 0)
        return jnp.minimum(c, last_blk)

    grid_spec = pltpu.PrefetchScalarGridSpec(
        num_scalar_prefetch=1,
        grid=(B, nq),
        in_specs=[
            pl.BlockSpec((1, tq, C), lambda b, c, L: (b, clamp(c, L[b]), 0)),          # q
            pl.BlockSpec((1, tq, C), lambda b, c, L: (b, clamp(c, L[b]), 0)),          # k half 0
            pl.BlockSpec((1, tq, C), lambda b, c, L: (b, clamp(c, L[b]) + 1, 0)),      # k half 1
            pl.BlockSpec((1, tq, C), lambda b, c, L: (b, clamp(c, L[b]), 0)),          # v half 0
            pl.BlockSpec((1, tq, C), lambda b, c, L: (b, clamp(c, L[b]) + 1, 0)),      # v half 1
            pl.BlockSpec((1, 1, 1, tq), lambda b, c, L: (b, clamp(c, L[b]), 0, 0)),    # bias 0
            pl.BlockSpec((1, 1, 1, tq), lambda b, c, L: (b, clamp(c, L[b]) + 1, 0, 0)),  # bias 1
            pl.BlockSpec((1, tq, 1), lambda b, c, L: (b, clamp(c, L[b]), 0)),          # query mask
            pl.BlockSpec((C, C), lambda b, c, L: (0, 0)),                              # out-proj W
            pl.BlockSpec((1, C), lambda b, c, L: (0, 0)),                              # out-proj b
        ],
        out_specs=pl.BlockSpec((1, C, tq), lambda b, c, L: (b, 0, c)),
        scratch_shapes=[pltpu.VMEM((tq, C), jnp.float32)],
    )

    out_nct = pl.pallas_call(
        functools.partial(_band_attn_proj_kernel, n_head=n_head, head_dim=hd,
                          w=w, seq_len=T, tq=tq),
        grid_spec=grid_spec,
        out_shape=jax.ShapeDtypeStruct((B, C, T), jnp.float32),
        compiler_params=pltpu.CompilerParams(
            dimension_semantics=("parallel", "parallel"),
            vmem_limit_bytes=32 * 1024 * 1024),
    )(lens, q, k_pad, k_pad, v_pad, v_pad, kv_bias, kv_bias, m_row, wp, bp)

    qx_mask = mask.reshape(B, 1, T)
    return out_nct, qx_mask


# ----------------------------------------------------------------------------
# Deterministic parameter construction + smoke test
# ----------------------------------------------------------------------------
def make_params(key, C):
    keys = jax.random.split(key, 17)

    def rnd(k, shape, s=0.1):
        return jax.random.normal(k, shape, dtype=jnp.float32) * s

    return {
        # depthwise conv weights, stored as (kernel=3, C): dw[j, c] == torch W[c, 0, j]
        "dw_q": rnd(keys[0], (3, C)),
        "dw_k": rnd(keys[1], (3, C)),
        "dw_v": rnd(keys[2], (3, C)),
        # LayerNorm affine (torch shape (1, C, 1) -> (1, C))
        "ln_q_g": 1.0 + rnd(keys[3], (1, C)), "ln_q_b": rnd(keys[4], (1, C)),
        "ln_k_g": 1.0 + rnd(keys[5], (1, C)), "ln_k_b": rnd(keys[6], (1, C)),
        "ln_v_g": 1.0 + rnd(keys[7], (1, C)), "ln_v_b": rnd(keys[8], (1, C)),
        # 1x1 convs, pre-transposed to (C_in, C_out): out = x @ W_t + b
        "wq_t": rnd(keys[9], (C, C)), "bq": rnd(keys[10], (1, C)),
        "wk_t": rnd(keys[11], (C, C)), "bk": rnd(keys[12], (1, C)),
        "wv_t": rnd(keys[13], (C, C)), "bv": rnd(keys[14], (1, C)),
        "wp_t": rnd(keys[15], (C, C)), "bp": rnd(keys[16], (1, C)),
    }


if __name__ == "__main__":
    B, C, T = 2, 32, 16
    n_head, window_size = 4, 4          # head_dim = 8, window_overlap = 2

    root = jax.random.PRNGKey(0)
    k_params, k_x = jax.random.split(root)
    params = make_params(k_params, C)

    x = jax.random.normal(k_x, (B, C, T), dtype=jnp.float32)    # NCT, like PyTorch
    valid_lens = jnp.array([T, 12])
    mask = (jnp.arange(T)[None, None, :] < valid_lens[:, None, None])  # (B, 1, T) bool

    out, qx_mask = local_masked_mhca(x, mask, params,
                                     n_head=n_head, window_size=window_size)
    out = jax.block_until_ready(out)

    assert out.shape == (B, C, T) and out.dtype == jnp.float32
    assert qx_mask.shape == (B, 1, T) and qx_mask.dtype == jnp.bool_
    assert bool(jnp.all(jnp.isfinite(out)))
    # masked query positions must be exactly zero (multiplied by qx_mask)
    assert bool(jnp.all(jnp.where(qx_mask, True, out == 0.0)))

    print("KERNEL_OK")
</pallas_src>

<mosaic_0001>
module attributes {stable_mosaic.version = 11 : i64} {
  func.func @_qkv_prep_kernel(%arg0: i32, %arg1: i32, %arg2: memref<1x32x16xf32, #tpu.memory_space<vmem>>, %arg3: memref<1x16x1xf32, #tpu.memory_space<vmem>>, %arg4: memref<18x32xf32, #tpu.memory_space<vmem>>, %arg5: memref<3x32x32xbf16, #tpu.memory_space<vmem>>, %arg6: memref<1x16x32xbf16, #tpu.memory_space<vmem>>, %arg7: memref<1x16x32xbf16, #tpu.memory_space<vmem>>, %arg8: memref<1x16x32xbf16, #tpu.memory_space<vmem>>, %arg9: memref<16x32xf32, #tpu.memory_space<vmem>>, %arg10: memref<1x32xf32, #tpu.memory_space<vmem>>) attributes {dimension_semantics = [#tpu.dimension_semantics<parallel>, #tpu.dimension_semantics<arbitrary>], iteration_bounds = array<i64: 2, 2>, scalar_prefetch = 0 : i64, scratch_operands = 2 : i64, tpu.core_type = #tpu.core_type<tc>, window_params = [{transform_indices = @transform_0, window_bounds = array<i64: 1, 32, 16>}, {transform_indices = @transform_1, window_bounds = array<i64: 1, 16, 1>}, {pipeline_mode = #tpu.pipeline_mode<synchronous>, transform_indices = @transform_2, window_bounds = array<i64: 18, 32>}, {pipeline_mode = #tpu.pipeline_mode<synchronous>, transform_indices = @transform_3, window_bounds = array<i64: 3, 32, 32>}, {transform_indices = @transform_4, window_bounds = array<i64: 1, 16, 32>}, {transform_indices = @transform_5, window_bounds = array<i64: 1, 16, 32>}, {transform_indices = @transform_6, window_bounds = array<i64: 1, 16, 32>}]} {
    %c0 = arith.constant 0 : index
    %c0_0 = arith.constant 0 : index
    %c0_1 = arith.constant 0 : index
    %0 = vector.load %arg2[%c0, %c0_0, %c0_1] : memref<1x32x16xf32, #tpu.memory_space<vmem>>, vector<1x32x16xf32>
    %1 = vector.shape_cast %0 : vector<1x32x16xf32> to vector<32x16xf32>
    %2 = tpu.transpose %1, [1, 0] : vector<32x16xf32> -> vector<16x32xf32>
    %c0_i32 = arith.constant 0 : i32
    %3 = arith.cmpi sgt, %arg1, %c0_i32 : i32
    %4 = arith.extui %3 : i1 to i32
    %c0_i32_2 = arith.constant 0 : i32
    %5 = arith.cmpi ne, %4, %c0_i32_2 : i32
    scf.if %5 {
      %c0_9 = arith.constant 0 : index
      %c0_10 = arith.constant 0 : index
      %12 = vector.load %arg4[%c0_9, %c0_10] : memref<18x32xf32, #tpu.memory_space<vmem>>, vector<18x32xf32>
      %c0_11 = arith.constant 0 : index
      %c0_12 = arith.constant 0 : index
      %13 = vector.load %arg9[%c0_11, %c0_12] : memref<16x32xf32, #tpu.memory_space<vmem>>, vector<16x32xf32>
      %c0_13 = arith.constant 0 : index
      %c0_14 = arith.constant 0 : index
      %14 = vector.load %arg10[%c0_13, %c0_14] : memref<1x32xf32, #tpu.memory_space<vmem>>, vector<1x32xf32>
      %c1_i32 = arith.constant 1 : i32
      %15 = arith.cmpi eq, %arg1, %c1_i32 : i32
      %cst_15 = arith.constant 0.000000e+00 : f32
      %16 = vector.broadcast %cst_15 : f32 to vector<1x32xf32>
      %17 = vector.extract_strided_slice %2 {offsets = [0, 0], sizes = [1, 32], strides = [1, 1]} : vector<16x32xf32> to vector<1x32xf32>
      %18 = arith.select %15, %16, %17 : vector<1x32xf32>
      %c0_16 = arith.constant 0 : index
      %c0_17 = arith.constant 0 : index
      %c0_18 = arith.constant 0 : index
      %19 = vector.load %arg3[%c0_16, %c0_17, %c0_18] : memref<1x16x1xf32, #tpu.memory_space<vmem>>, vector<1x16x1xf32>
      %20 = vector.shape_cast %19 : vector<1x16x1xf32> to vector<16x1xf32>
      %21 = tpu.concatenate %14, %13, %18 in 0 : vector<1x32xf32>, vector<16x32xf32>, vector<1x32xf32> -> vector<18x32xf32>
      %22 = vector.extract_strided_slice %21 {offsets = [0, 0], sizes = [16, 32], strides = [1, 1]} : vector<18x32xf32> to vector<16x32xf32>
      %23 = vector.extract_strided_slice %21 {offsets = [1, 0], sizes = [16, 32], strides = [1, 1]} : vector<18x32xf32> to vector<16x32xf32>
      %24 = vector.extract_strided_slice %21 {offsets = [2, 0], sizes = [16, 32], strides = [1, 1]} : vector<18x32xf32> to vector<16x32xf32>
      %25 = vector.extract_strided_slice %12 {offsets = [0, 0], sizes = [3, 32], strides = [1, 1]} : vector<18x32xf32> to vector<3x32xf32>
      %26 = vector.extract_strided_slice %12 {offsets = [9, 0], sizes = [1, 32], strides = [1, 1]} : vector<18x32xf32> to vector<1x32xf32>
      %27 = vector.extract_strided_slice %12 {offsets = [10, 0], sizes = [1, 32], strides = [1, 1]} : vector<18x32xf32> to vector<1x32xf32>
      %28 = vector.extract_strided_slice %12 {offsets = [15, 0], sizes = [1, 32], strides = [1, 1]} : vector<18x32xf32> to vector<1x32xf32>
      %29 = vector.extract_strided_slice %25 {offsets = [0, 0], sizes = [1, 32], strides = [1, 1]} : vector<3x32xf32> to vector<1x32xf32>
      %30 = vector.broadcast %29 : vector<1x32xf32> to vector<16x32xf32>
      %31 = arith.mulf %30, %22 : vector<16x32xf32>
      %32 = vector.extract_strided_slice %25 {offsets = [1, 0], sizes = [1, 32], strides = [1, 1]} : vector<3x32xf32> to vector<1x32xf32>
      %33 = vector.broadcast %32 : vector<1x32xf32> to vector<16x32xf32>
      %34 = arith.mulf %33, %23 : vector<16x32xf32>
      %35 = arith.addf %31, %34 : vector<16x32xf32>
      %36 = vector.extract_strided_slice %25 {offsets = [2, 0], sizes = [1, 32], strides = [1, 1]} : vector<3x32xf32> to vector<1x32xf32>
      %37 = vector.broadcast %36 : vector<1x32xf32> to vector<16x32xf32>
      %38 = arith.mulf %37, %24 : vector<16x32xf32>
      %39 = arith.addf %35, %38 : vector<16x32xf32>
      %40 = vector.broadcast %20 : vector<16x1xf32> to vector<16x32xf32>
      %41 = arith.mulf %39, %40 : vector<16x32xf32>
      %cst_19 = arith.constant dense<0.000000e+00> : vector<16xf32>
      %42 = vector.multi_reduction <add>, %41, %cst_19 [1] : vector<16x32xf32> to vector<16xf32>
      %43 = vector.shape_cast %42 : vector<16xf32> to vector<16x1xf32>
      %cst_20 = arith.constant 3.200000e+01 : f32
      %44 = vector.broadcast %cst_20 : f32 to vector<16x1xf32>
      %45 = arith.divf %43, %44 : vector<16x1xf32>
      %46 = vector.broadcast %45 : vector<16x1xf32> to vector<16x32xf32>
      %47 = arith.subf %41, %46 : vector<16x32xf32>
      %48 = arith.mulf %47, %47 : vector<16x32xf32>
      %cst_21 = arith.constant dense<0.000000e+00> : vector<16xf32>
      %49 = vector.multi_reduction <add>, %48, %cst_21 [1] : vector<16x32xf32> to vector<16xf32>
      %50 = vector.shape_cast %49 : vector<16xf32> to vector<16x1xf32>
      %cst_22 = arith.constant 3.200000e+01 : f32
      %51 = vector.broadcast %cst_22 : f32 to vector<16x1xf32>
      %52 = arith.divf %50, %51 : vector<16x1xf32>
      %cst_23 = arith.constant 9.99999974E-6 : f32
      %53 = vector.broadcast %cst_23 : f32 to vector<16x1xf32>
      %54 = arith.addf %52, %53 : vector<16x1xf32>
      %55 = math.rsqrt %54 : vector<16x1xf32>
      %56 = vector.broadcast %55 : vector<16x1xf32> to vector<16x32xf32>
      %57 = arith.mulf %47, %56 : vector<16x32xf32>
      %58 = vector.broadcast %26 : vector<1x32xf32> to vector<16x32xf32>
      %59 = arith.mulf %57, %58 : vector<16x32xf32>
      %60 = vector.broadcast %27 : vector<1x32xf32> to vector<16x32xf32>
      %61 = arith.addf %59, %60 : vector<16x32xf32>
      %62 = arith.truncf %61 : vector<16x32xf32> to vector<16x32xbf16>
      %c0_24 = arith.constant 0 : index
      %c0_25 = arith.constant 0 : index
      %c0_26 = arith.constant 0 : index
      %63 = vector.load %arg5[%c0_24, %c0_25, %c0_26] : memref<3x32x32xbf16, #tpu.memory_space<vmem>>, vector<1x32x32xbf16>
      %64 = vector.shape_cast %63 : vector<1x32x32xbf16> to vector<32x32xbf16>
      %cst_27 = arith.constant dense<0.000000e+00> : vector<16x32xf32>
      %65 = tpu.matmul %62, %64, %cst_27 {dimension_numbers = #tpu.dot_dimension_numbers<[1], [0], [0], [1], [0, 0, 1, 1], [], []>} : vector<16x32xbf16>, vector<32x32xbf16>, vector<16x32xf32> -> vector<16x32xf32>
      %66 = vector.broadcast %28 : vector<1x32xf32> to vector<16x32xf32>
      %67 = arith.addf %65, %66 : vector<16x32xf32>
      %68 = arith.truncf %67 : vector<16x32xf32> to vector<16x32xbf16>
      %c0_28 = arith.constant 0 : index
      %c0_29 = arith.constant 0 : index
      %c0_30 = arith.constant 0 : index
      %69 = vector.load %arg6[%c0_28, %c0_29, %c0_30] : memref<1x16x32xbf16, #tpu.memory_space<vmem>>, vector<1x16x32xbf16>
      %70 = vector.shape_cast %69 : vector<1x16x32xbf16> to vector<16x32xbf16>
      %71 = vector.shape_cast %68 : vector<16x32xbf16> to vector<1x16x32xbf16>
      tpu.vector_store %arg6[%c0_28, %c0_29, %c0_30], %71 {strides = array<i32>} : memref<1x16x32xbf16, #tpu.memory_space<vmem>>, vector<1x16x32xbf16>,
      %72 = vector.extract_strided_slice %12 {offsets = [3, 0], sizes = [3, 32], strides = [1, 1]} : vector<18x32xf32> to vector<3x32xf32>
      %73 = vector.extract_strided_slice %12 {offsets = [11, 0], sizes = [1, 32], strides = [1, 1]} : vector<18x32xf32> to vector<1x32xf32>
      %74 = vector.extract_strided_slice %12 {offsets = [12, 0], sizes = [1, 32], strides = [1, 1]} : vector<18x32xf32> to vector<1x32xf32>
      %75 = vector.extract_strided_slice %12 {offsets = [16, 0], sizes = [1, 32], strides = [1, 1]} : vector<18x32xf32> to vector<1x32xf32>
      %76 = vector.extract_strided_slice %72 {offsets = [0, 0], sizes = [1, 32], strides = [1, 1]} : vector<3x32xf32> to vector<1x32xf32>
      %77 = vector.broadcast %76 : vector<1x32xf32> to vector<16x32xf32>
      %78 = arith.mulf %77, %22 : vector<16x32xf32>
      %79 = vector.extract_strided_slice %72 {offsets = [1, 0], sizes = [1, 32], strides = [1, 1]} : vector<3x32xf32> to vector<1x32xf32>
      %80 = vector.broadcast %79 : vector<1x32xf32> to vector<16x32xf32>
      %81 = arith.mulf %80, %23 : vector<16x32xf32>
      %82 = arith.addf %78, %81 : vector<16x32xf32>
      %83 = vector.extract_strided_slice %72 {offsets = [2, 0], sizes = [1, 32], strides = [1, 1]} : vector<3x32xf32> to vector<1x32xf32>
      %84 = vector.broadcast %83 : vector<1x32xf32> to vector<16x32xf32>
      %85 = arith.mulf %84, %24 : vector<16x32xf32>
      %86 = arith.addf %82, %85 : vector<16x32xf32>
      %87 = vector.broadcast %20 : vector<16x1xf32> to vector<16x32xf32>
      %88 = arith.mulf %86, %87 : vector<16x32xf32>
      %cst_31 = arith.constant dense<0.000000e+00> : vector<16xf32>
      %89 = vector.multi_reduction <add>, %88, %cst_31 [1] : vector<16x32xf32> to vector<16xf32>
      %90 = vector.shape_cast %89 : vector<16xf32> to vector<16x1xf32>
      %cst_32 = arith.constant 3.200000e+01 : f32
      %91 = vector.broadcast %cst_32 : f32 to vector<16x1xf32>
      %92 = arith.divf %90, %91 : vector<16x1xf32>
      %93 = vector.broadcast %92 : vector<16x1xf32> to vector<16x32xf32>
      %94 = arith.subf %88, %93 : vector<16x32xf32>
      %95 = arith.mulf %94, %94 : vector<16x32xf32>
      %cst_33 = arith.constant dense<0.000000e+00> : vector<16xf32>
      %96 = vector.multi_reduction <add>, %95, %cst_33 [1] : vector<16x32xf32> to vector<16xf32>
      %97 = vector.shape_cast %96 : vector<16xf32> to vector<16x1xf32>
      %cst_34 = arith.constant 3.200000e+01 : f32
      %98 = vector.broadcast %cst_34 : f32 to vector<16x1xf32>
      %99 = arith.divf %97, %98 : vector<16x1xf32>
      %cst_35 = arith.constant 9.99999974E-6 : f32
      %100 = vector.broadcast %cst_35 : f32 to vector<16x1xf32>
      %101 = arith.addf %99, %100 : vector<16x1xf32>
      %102 = math.rsqrt %101 : vector<16x1xf32>
      %103 = vector.broadcast %102 : vector<16x1xf32> to vector<16x32xf32>
      %104 = arith.mulf %94, %103 : vector<16x32xf32>
      %105 = vector.broadcast %73 : vector<1x32xf32> to vector<16x32xf32>
      %106 = arith.mulf %104, %105 : vector<16x32xf32>
      %107 = vector.broadcast %74 : vector<1x32xf32> to vector<16x32xf32>
      %108 = arith.addf %106, %107 : vector<16x32xf32>
      %109 = arith.truncf %108 : vector<16x32xf32> to vector<16x32xbf16>
      %c1 = arith.constant 1 : index
      %c0_36 = arith.constant 0 : index
      %c0_37 = arith.constant 0 : index
      %110 = vector.load %arg5[%c1, %c0_36, %c0_37] : memref<3x32x32xbf16, #tpu.memory_space<vmem>>, vector<1x32x32xbf16>
      %111 = vector.shape_cast %110 : vector<1x32x32xbf16> to vector<32x32xbf16>
      %cst_38 = arith.constant dense<0.000000e+00> : vector<16x32xf32>
      %112 = tpu.matmul %109, %111, %cst_38 {dimension_numbers = #tpu.dot_dimension_numbers<[1], [0], [0], [1], [0, 0, 1, 1], [], []>} : vector<16x32xbf16>, vector<32x32xbf16>, vector<16x32xf32> -> vector<16x32xf32>
      %113 = vector.broadcast %75 : vector<1x32xf32> to vector<16x32xf32>
      %114 = arith.addf %112, %113 : vector<16x32xf32>
      %115 = arith.truncf %114 : vector<16x32xf32> to vector<16x32xbf16>
      %c0_39 = arith.constant 0 : index
      %c0_40 = arith.constant 0 : index
      %c0_41 = arith.constant 0 : index
      %116 = vector.load %arg7[%c0_39, %c0_40, %c0_41] : memref<1x16x32xbf16, #tpu.memory_space<vmem>>, vector<1x16x32xbf16>
      %117 = vector.shape_cast %116 : vector<1x16x32xbf16> to vector<16x32xbf16>
      %118 = vector.shape_cast %115 : vector<16x32xbf16> to vector<1x16x32xbf16>
      tpu.vector_store %arg7[%c0_39, %c0_40, %c0_41], %118 {strides = array<i32>} : memref<1x16x32xbf16, #tpu.memory_space<vmem>>, vector<1x16x32xbf16>,
      %119 = vector.extract_strided_slice %12 {offsets = [6, 0], sizes = [3, 32], strides = [1, 1]} : vector<18x32xf32> to vector<3x32xf32>
      %120 = vector.extract_strided_slice %12 {offsets = [13, 0], sizes = [1, 32], strides = [1, 1]} : vector<18x32xf32> to vector<1x32xf32>
      %121 = vector.extract_strided_slice %12 {offsets = [14, 0], sizes = [1, 32], strides = [1, 1]} : vector<18x32xf32> to vector<1x32xf32>
      %122 = vector.extract_strided_slice %12 {offsets = [17, 0], sizes = [1, 32], strides = [1, 1]} : vector<18x32xf32> to vector<1x32xf32>
      %123 = vector.extract_strided_slice %119 {offsets = [0, 0], sizes = [1, 32], strides = [1, 1]} : vector<3x32xf32> to vector<1x32xf32>
      %124 = vector.broadcast %123 : vector<1x32xf32> to vector<16x32xf32>
      %125 = arith.mulf %124, %22 : vector<16x32xf32>
      %126 = vector.extract_strided_slice %119 {offsets = [1, 0], sizes = [1, 32], strides = [1, 1]} : vector<3x32xf32> to vector<1x32xf32>
      %127 = vector.broadcast %126 : vector<1x32xf32> to vector<16x32xf32>
      %128 = arith.mulf %127, %23 : vector<16x32xf32>
      %129 = arith.addf %125, %128 : vector<16x32xf32>
      %130 = vector.extract_strided_slice %119 {offsets = [2, 0], sizes = [1, 32], strides = [1, 1]} : vector<3x32xf32> to vector<1x32xf32>
      %131 = vector.broadcast %130 : vector<1x32xf32> to vector<16x32xf32>
      %132 = arith.mulf %131, %24 : vector<16x32xf32>
      %133 = arith.addf %129, %132 : vector<16x32xf32>
      %134 = vector.broadcast %20 : vector<16x1xf32> to vector<16x32xf32>
      %135 = arith.mulf %133, %134 : vector<16x32xf32>
      %cst_42 = arith.constant dense<0.000000e+00> : vector<16xf32>
      %136 = vector.multi_reduction <add>, %135, %cst_42 [1] : vector<16x32xf32> to vector<16xf32>
      %137 = vector.shape_cast %136 : vector<16xf32> to vector<16x1xf32>
      %cst_43 = arith.constant 3.200000e+01 : f32
      %138 = vector.broadcast %cst_43 : f32 to vector<16x1xf32>
      %139 = arith.divf %137, %138 : vector<16x1xf32>
      %140 = vector.broadcast %139 : vector<16x1xf32> to vector<16x32xf32>
      %141 = arith.subf %135, %140 : vector<16x32xf32>
      %142 = arith.mulf %141, %141 : vector<16x32xf32>
      %cst_44 = arith.constant dense<0.000000e+00> : vector<16xf32>
      %143 = vector.multi_reduction <add>, %142, %cst_44 [1] : vector<16x32xf32> to vector<16xf32>
      %144 = vector.shape_cast %143 : vector<16xf32> to vector<16x1xf32>
      %cst_45 = arith.constant 3.200000e+01 : f32
      %145 = vector.broadcast %cst_45 : f32 to vector<16x1xf32>
      %146 = arith.divf %144, %145 : vector<16x1xf32>
      %cst_46 = arith.constant 9.99999974E-6 : f32
      %147 = vector.broadcast %cst_46 : f32 to vector<16x1xf32>
      %148 = arith.addf %146, %147 : vector<16x1xf32>
      %149 = math.rsqrt %148 : vector<16x1xf32>
      %150 = vector.broadcast %149 : vector<16x1xf32> to vector<16x32xf32>
      %151 = arith.mulf %141, %150 : vector<16x32xf32>
      %152 = vector.broadcast %120 : vector<1x32xf32> to vector<16x32xf32>
      %153 = arith.mulf %151, %152 : vector<16x32xf32>
      %154 = vector.broadcast %121 : vector<1x32xf32> to vector<16x32xf32>
      %155 = arith.addf %153, %154 : vector<16x32xf32>
      %156 = arith.truncf %155 : vector<16x32xf32> to vector<16x32xbf16>
      %c2 = arith.constant 2 : index
      %c0_47 = arith.constant 0 : index
      %c0_48 = arith.constant 0 : index
      %157 = vector.load %arg5[%c2, %c0_47, %c0_48] : memref<3x32x32xbf16, #tpu.memory_space<vmem>>, vector<1x32x32xbf16>
      %158 = vector.shape_cast %157 : vector<1x32x32xbf16> to vector<32x32xbf16>
      %cst_49 = arith.constant dense<0.000000e+00> : vector<16x32xf32>
      %159 = tpu.matmul %156, %158, %cst_49 {dimension_numbers = #tpu.dot_dimension_numbers<[1], [0], [0], [1], [0, 0, 1, 1], [], []>} : vector<16x32xbf16>, vector<32x32xbf16>, vector<16x32xf32> -> vector<16x32xf32>
      %160 = vector.broadcast %122 : vector<1x32xf32> to vector<16x32xf32>
      %161 = arith.addf %159, %160 : vector<16x32xf32>
      %162 = arith.truncf %161 : vector<16x32xf32> to vector<16x32xbf16>
      %c0_50 = arith.constant 0 : index
      %c0_51 = arith.constant 0 : index
      %c0_52 = arith.constant 0 : index
      %163 = vector.load %arg8[%c0_50, %c0_51, %c0_52] : memref<1x16x32xbf16, #tpu.memory_space<vmem>>, vector<1x16x32xbf16>
      %164 = vector.shape_cast %163 : vector<1x16x32xbf16> to vector<16x32xbf16>
      %165 = vector.shape_cast %162 : vector<16x32xbf16> to vector<1x16x32xbf16>
      tpu.vector_store %arg8[%c0_50, %c0_51, %c0_52], %165 {strides = array<i32>} : memref<1x16x32xbf16, #tpu.memory_space<vmem>>, vector<1x16x32xbf16>,
    } else {
    }
    %c0_i32_3 = arith.constant 0 : i32
    %6 = arith.cmpi eq, %arg1, %c0_i32_3 : i32
    %cst = arith.constant 0.000000e+00 : f32
    %7 = vector.broadcast %cst : f32 to vector<1x32xf32>
    %c15 = arith.constant 15 : index
    %c0_4 = arith.constant 0 : index
    %8 = vector.load %arg9[%c15, %c0_4] : memref<16x32xf32, #tpu.memory_space<vmem>>, vector<1x32xf32>
    %9 = arith.select %6, %7, %8 : vector<1x32xf32>
    %c0_5 = arith.constant 0 : index
    %c0_6 = arith.constant 0 : index
    %10 = vector.load %arg10[%c0_5, %c0_6] : memref<1x32xf32, #tpu.memory_space<vmem>>, vector<1x32xf32>
    tpu.vector_store %arg10[%c0_5, %c0_6], %9 {strides = array<i32>} : memref<1x32xf32, #tpu.memory_space<vmem>>, vector<1x32xf32>,
    %c0_7 = arith.constant 0 : index
    %c0_8 = arith.constant 0 : index
    %11 = vector.load %arg9[%c0_7, %c0_8] : memref<16x32xf32, #tpu.memory_space<vmem>>, vector<16x32xf32>
    tpu.vector_store %arg9[%c0_7, %c0_8], %2 {strides = array<i32>} : memref<16x32xf32, #tpu.memory_space<vmem>>, vector<16x32xf32>,
    return
  }
  func.func @transform_0(%arg0: i32, %arg1: i32) -> (i32, i32, i32) {
    %c0_i32 = arith.constant 0 : i32
    %0 = arith.minsi %arg1, %c0_i32 : i32
    %c0_i32_0 = arith.constant 0 : i32
    %c0_i32_1 = arith.constant 0 : i32
    return %arg0, %c0_i32_0, %0 : i32, i32, i32
  }
  func.func @transform_1(%arg0: i32, %arg1: i32) -> (i32, i32, i32) {
    %c1_i32 = arith.constant 1 : i32
    %0 = arith.subi %arg1, %c1_i32 : i32
    %c0_i32 = arith.constant 0 : i32
    %1 = arith.maxsi %0, %c0_i32 : i32
    %c0_i32_0 = arith.constant 0 : i32
    %c0_i32_1 = arith.constant 0 : i32
    return %arg0, %1, %c0_i32_0 : i32, i32, i32
  }
  func.func @transform_2(%arg0: i32, %arg1: i32) -> (i32, i32) {
    %c0_i32 = arith.constant 0 : i32
    %c0_i32_0 = arith.constant 0 : i32
    %c0_i32_1 = arith.constant 0 : i32
    return %c0_i32, %c0_i32_0 : i32, i32
  }
  func.func @transform_3(%arg0: i32, %arg1: i32) -> (i32, i32, i32) {
    %c0_i32 = arith.constant 0 : i32
    %c0_i32_0 = arith.constant 0 : i32
    %c0_i32_1 = arith.constant 0 : i32
    %c0_i32_2 = arith.constant 0 : i32
    return %c0_i32, %c0_i32_0, %c0_i32_1 : i32, i32, i32
  }
  func.func @transform_4(%arg0: i32, %arg1: i32) -> (i32, i32, i32) {
    %c1_i32 = arith.constant 1 : i32
    %0 = arith.subi %arg1, %c1_i32 : i32
    %c0_i32 = arith.constant 0 : i32
    %1 = arith.maxsi %0, %c0_i32 : i32
    %c0_i32_0 = arith.constant 0 : i32
    %c0_i32_1 = arith.constant 0 : i32
    return %arg0, %1, %c0_i32_0 : i32, i32, i32
  }
  func.func @transform_5(%arg0: i32, %arg1: i32) -> (i32, i32, i32) {
    %c1_i32 = arith.constant 1 : i32
    %0 = arith.subi %arg1, %c1_i32 : i32
    %c0_i32 = arith.constant 0 : i32
    %1 = arith.maxsi %0, %c0_i32 : i32
    %c0_i32_0 = arith.constant 0 : i32
    %c0_i32_1 = arith.constant 0 : i32
    return %arg0, %1, %c0_i32_0 : i32, i32, i32
  }
  func.func @transform_6(%arg0: i32, %arg1: i32) -> (i32, i32, i32) {
    %c1_i32 = arith.constant 1 : i32
    %0 = arith.subi %arg1, %c1_i32 : i32
    %c0_i32 = arith.constant 0 : i32
    %1 = arith.maxsi %0, %c0_i32 : i32
    %c0_i32_0 = arith.constant 0 : i32
    %c0_i32_1 = arith.constant 0 : i32
    return %arg0, %1, %c0_i32_0 : i32, i32, i32
  }
}

</mosaic_0001>

<llo_original>
// kernel: tpu_custom_call.1
$region0: #{tpu_custom_call.1}
  #allocation0 [shape = 'u32[]', space=smem, size = 0x4, offset = 0x4, fixed_abs, tag = 'smem constant byte address 0x4 - core index']
  #allocation1 [shape = 'u32[144,128]{1,0:T(1,128)}', space=vmem, size = 0x12000, scoped, tag = 'internal scratch']
  #allocation2 [shape = 'f32[16,32]{1,0:T(8,128)}', space=vmem, size = 0x2000, scoped, tag = 'scratch operand']
  #allocation3 [shape = 'f32[1,32]{1,0:T(1,128)}', space=vmem, size = 0x200, scoped, tag = 'scratch operand']
  %s0 = inlined_call_operand.vmem [shape: f32[2,32,16], index: 0, kind: input, shape index: {}]
  %s1 = inlined_call_operand.vmem [shape: f32[2,16,1], index: 1, kind: input, shape index: {}]
  %s2 = inlined_call_operand.vmem [shape: f32[18,32], index: 2, kind: input, shape index: {}]
  %s3 = inlined_call_operand.vmem [shape: bf16[3,32,32], index: 3, kind: input, shape index: {}]
  %s4 = inlined_call_operand.hbm [shape: bf16[2,16,32], index: 4, kind: output, shape index: {0}]
  %s5 = inlined_call_operand.hbm [shape: bf16[2,16,32], index: 5, kind: output, shape index: {1}]
  %s6 = inlined_call_operand.hbm [shape: bf16[2,16,32], index: 6, kind: output, shape index: {2}]
  %7 = xla_tuple %s4, %s5, %s6
  %s8 = sld [smem:[#allocation0]]
  $region69: #{tpu_custom_call.1} parent=0
    _
  %s10 = ssub.s32 1, %s8
  %s11 = scalar_select 0, %s10, %s8
  $region1: #{tpu_custom_call.1} parent=0
    #allocation4 [shape = 'u8[8192]{0}', space=vmem, size = 0x2000, scoped, tag = 'output window, operand 0']
    #allocation5 [shape = 's32[2]{0}', space=sflag, size = 0x8, scoped, tag = 'scoped memory for tpu_custom_call.1']
    #allocation6 [shape = 'u8[8192]{0}', space=vmem, size = 0x2000, scoped, tag = 'output window, operand 1']
    #allocation7 [shape = 's32[2]{0}', space=sflag, size = 0x8, scoped, tag = 'scoped memory for tpu_custom_call.1']
    #allocation8 [shape = 'u8[8192]{0}', space=vmem, size = 0x2000, scoped, tag = 'output window, operand 2']
    %12 = vsyncpa [#allocation5], 0
    %s13 = scalar_lea.sflag [#allocation5], 1
    %14 = vsyncpa %s13, 0
    %15 = vsyncpa [#allocation7], 0
    %s16 = scalar_lea.sflag [#allocation7], 1
    %17 = vsyncpa %s16, 0
    loop: start=0, step=1, limit=6
    $region2: #{tpu_custom_call.1} parent=1 // loop_pre_header
      _
    $region3: #{tpu_custom_call.1} parent=1 // loop_header
      %s19 = sphi 0, %s23
      %p20 = scmp.ge.s32.totalorder %s19, 6
      %s26 = sphi 0, %s38
      %s27 = sphi 0, %s34
      %s28 = sphi 0, %s26
      %s29 = sphi 0, %s27
      %s30 = sphi 0, %s28
      %s31 = sphi 0, %s29
      %s47 = sphi 0, %s49
      %s50 = sphi 0, %s47
      %s51 = sphi 0, %s50
      %s67 = sphi 0, %s51
      %s81 = sphi 0, %s83
      %s84 = sphi 0, %s81
      %s85 = sphi 0, %s84
      %s101 = sphi 0, %s85
      %s105 = sphi 0, %s105
      %s107 = sphi 0, %s105
      %s108 = sphi 0, %s107
      %s122 = sphi 0, %s108
      %s126 = sphi 0, %s126
      %s128 = sphi 0, %s126
      %s129 = sphi 0, %s128
      %s143 = sphi 0, %s129
      %s157 = sphi 0, %s159
      %s160 = sphi 0, %s157
      %s161 = sphi 0, %s160
      %s177 = sphi 0, %s161
      %s191 = sphi 0, %s193
      %s194 = sphi 0, %s191
      %s195 = sphi 0, %s194
      %s211 = sphi 0, %s195
      %s225 = sphi 0, %s227
      %s228 = sphi 0, %s225
      %s229 = sphi 0, %s228
      %s245 = sphi 0, %s229
    $region4: #{tpu_custom_call.1} parent=1 // loop_header_branch
      %22 = sbr.rel (%p20) target = $region8
    $region5: #{tpu_custom_call.1} parent=1 // loop_body
      %s24 = ssub.s32 %s19, 1
      %s25 = ssub.s32 %s19, 2
      %s32 = sadd.s32 1, %s27
      %p33 = scmp.ge.s32.totalorder %s32, 2
      %s34 = scalar_select %p33, 0, %s32
      %s35 = sadd.s32 1, %s26
      %s36 = scalar_select %p33, %s35, %s26
      %p37 = scmp.ge.s32.totalorder %s36, 2
      %s38 = scalar_select %p37, 0, %s36
      %p39 = scmp.lt.s32.totalorder %s27, 0
      %s40 = scalar_select %p39, %s27, 0
      %p41 = scmp.lt.s32.totalorder %s34, 0
      %s42 = scalar_select %p41, %s34, 0
      %s43 = ssub.s32 %s26, %s38
      %s44 = ssub.s32 %s40, %s42
      %s45 = sor.u32 %s43, %s44
      %p46 = scmp.eq.s32.totalorder %s45, 0
      %s48 = sadd.s32 %s47, 1
      %s49 = scalar_select %p46, %s47, %s48
      %p52 = pneg %p46
      %p53 = scmp.eq.s32.totalorder %s19, 3
      %p54 = por %p52, %p53
      %p55 = scmp.ne.s32.totalorder %s47, %s50
      %p56 = scmp.eq.s32.totalorder %s19, 0
      %p57 = por %p55, %p56
      %p58 = scmp.ne.s32.totalorder %s47, %s50
      %p59 = scmp.eq.s32.totalorder %s24, 3
      %p60 = por %p58, %p59
      %p61 = scmp.ne.s32.totalorder %s50, %s51
      %p62 = scmp.eq.s32.totalorder %s24, 0
      %p63 = por %p61, %p62
      %p64 = scmp.ne.s32.totalorder %s50, %s51
      %p65 = scmp.eq.s32.totalorder %s25, 3
      %p66 = por %p64, %p65
      %p68 = scmp.ne.s32.totalorder %s51, %s67
      %p69 = scmp.eq.s32.totalorder %s25, 0
      %p70 = por %p68, %p69
      %s71 = ssub.s32 %s27, 1
      %p72 = scmp.gt.s32.totalorder %s71, 0
      %s73 = scalar_select %p72, %s71, 0
      %s74 = ssub.s32 %s34, 1
      %p75 = scmp.gt.s32.totalorder %s74, 0
      %s76 = scalar_select %p75, %s74, 0
      %s77 = ssub.s32 %s26, %s38
      %s78 = ssub.s32 %s73, %s76
      %s79 = sor.u32 %s77, %s78
      %p80 = scmp.eq.s32.totalorder %s79, 0
      %s82 = sadd.s32 %s81, 1
      %s83 = scalar_select %p80, %s81, %s82
      %p86 = pneg %p80
      %p87 = scmp.eq.s32.totalorder %s19, 3
      %p88 = por %p86, %p87
      %p89 = scmp.ne.s32.totalorder %s81, %s84
      %p90 = scmp.eq.s32.totalorder %s19, 0
      %p91 = por %p89, %p90
      %p92 = scmp.ne.s32.totalorder %s81, %s84
      %p93 = scmp.eq.s32.totalorder %s24, 3
      %p94 = por %p92, %p93
      %p95 = scmp.ne.s32.totalorder %s84, %s85
      %p96 = scmp.eq.s32.totalorder %s24, 0
      %p97 = por %p95, %p96
      %p98 = scmp.ne.s32.totalorder %s84, %s85
      %p99 = scmp.eq.s32.totalorder %s25, 3
      %p100 = por %p98, %p99
      %p102 = scmp.ne.s32.totalorder %s85, %s101
      %p103 = scmp.eq.s32.totalorder %s25, 0
      %p104 = por %p102, %p103
      %s106 = sadd.s32 %s105, 1
      %p109 = scmp.eq.s32.totalorder %s19, 3
      %p110 = scmp.ne.s32.totalorder %s105, %s107
      %p111 = scmp.eq.s32.totalorder %s19, 0
      %p112 = por %p110, %p111
      %p113 = scmp.ne.s32.totalorder %s105, %s107
      %p114 = scmp.eq.s32.totalorder %s24, 3
      %p115 = por %p113, %p114
      %p116 = scmp.ne.s32.totalorder %s107, %s108
      %p117 = scmp.eq.s32.totalorder %s24, 0
      %p118 = por %p116, %p117
      %p119 = scmp.ne.s32.totalorder %s107, %s108
      %p120 = scmp.eq.s32.totalorder %s25, 3
      %p121 = por %p119, %p120
      %p123 = scmp.ne.s32.totalorder %s108, %s122
      %p124 = scmp.eq.s32.totalorder %s25, 0
      %p125 = por %p123, %p124
      %s127 = sadd.s32 %s126, 1
      %p130 = scmp.eq.s32.totalorder %s19, 3
      %p131 = scmp.ne.s32.totalorder %s126, %s128
      %p132 = scmp.eq.s32.totalorder %s19, 0
      %p133 = por %p131, %p132
      %p134 = scmp.ne.s32.totalorder %s126, %s128
      %p135 = scmp.eq.s32.totalorder %s24, 3
      %p136 = por %p134, %p135
      %p137 = scmp.ne.s32.totalorder %s128, %s129
      %p138 = scmp.eq.s32.totalorder %s24, 0
      %p139 = por %p137, %p138
      %p140 = scmp.ne.s32.totalorder %s128, %s129
      %p141 = scmp.eq.s32.totalorder %s25, 3
      %p142 = por %p140, %p141
      %p144 = scmp.ne.s32.totalorder %s129, %s143
      %p145 = scmp.eq.s32.totalorder %s25, 0
      %p146 = por %p144, %p145
      %s147 = ssub.s32 %s27, 1
      %p148 = scmp.gt.s32.totalorder %s147, 0
      %s149 = scalar_select %p148, %s147, 0
      %s150 = ssub.s32 %s34, 1
      %p151 = scmp.gt.s32.totalorder %s150, 0
      %s152 = scalar_select %p151, %s150, 0
      %s153 = ssub.s32 %s26, %s38
      %s154 = ssub.s32 %s149, %s152
      %s155 = sor.u32 %s153, %s154
      %p156 = scmp.eq.s32.totalorder %s155, 0
      %s158 = sadd.s32 %s157, 1
      %s159 = scalar_select %p156, %s157, %s158
      %p162 = pneg %p156
      %p163 = scmp.eq.s32.totalorder %s19, 3
      %p164 = por %p162, %p163
      %p165 = scmp.ne.s32.totalorder %s157, %s160
      %p166 = scmp.eq.s32.totalorder %s19, 0
      %p167 = por %p165, %p166
      %p168 = scmp.ne.s32.totalorder %s157, %s160
      %p169 = scmp.eq.s32.totalorder %s24, 3
      %p170 = por %p168, %p169
      %p171 = scmp.ne.s32.totalorder %s160, %s161
      %p172 = scmp.eq.s32.totalorder %s24, 0
      %p173 = por %p171, %p172
      %p174 = scmp.ne.s32.totalorder %s160, %s161
      %p175 = scmp.eq.s32.totalorder %s25, 3
      %p176 = por %p174, %p175
      %p178 = scmp.ne.s32.totalorder %s161, %s177
      %p179 = scmp.eq.s32.totalorder %s25, 0
      %p180 = por %p178, %p179
      %s181 = ssub.s32 %s27, 1
      %p182 = scmp.gt.s32.totalorder %s181, 0
      %s183 = scalar_select %p182, %s181, 0
      %s184 = ssub.s32 %s34, 1
      %p185 = scmp.gt.s32.totalorder %s184, 0
      %s186 = scalar_select %p185, %s184, 0
      %s187 = ssub.s32 %s26, %s38
      %s188 = ssub.s32 %s183, %s186
      %s189 = sor.u32 %s187, %s188
      %p190 = scmp.eq.s32.totalorder %s189, 0
      %s192 = sadd.s32 %s191, 1
      %s193 = scalar_select %p190, %s191, %s192
      %p196 = pneg %p190
      %p197 = scmp.eq.s32.totalorder %s19, 3
      %p198 = por %p196, %p197
      %p199 = scmp.ne.s32.totalorder %s191, %s194
      %p200 = scmp.eq.s32.totalorder %s19, 0
      %p201 = por %p199, %p200
      %p202 = scmp.ne.s32.totalorder %s191, %s194
      %p203 = scmp.eq.s32.totalorder %s24, 3
      %p204 = por %p202, %p203
      %p205 = scmp.ne.s32.totalorder %s194, %s195
      %p206 = scmp.eq.s32.totalorder %s24, 0
      %p207 = por %p205, %p206
      %p208 = scmp.ne.s32.totalorder %s194, %s195
      %p209 = scmp.eq.s32.totalorder %s25, 3
      %p210 = por %p208, %p209
      %p212 = scmp.ne.s32.totalorder %s195, %s211
      %p213 = scmp.eq.s32.totalorder %s25, 0
      %p214 = por %p212, %p213
      %s215 = ssub.s32 %s27, 1
      %p216 = scmp.gt.s32.totalorder %s215, 0
      %s217 = scalar_select %p216, %s215, 0
      %s218 = ssub.s32 %s34, 1
      %p219 = scmp.gt.s32.totalorder %s218, 0
      %s220 = scalar_select %p219, %s218, 0
      %s221 = ssub.s32 %s26, %s38
      %s222 = ssub.s32 %s217, %s220
      %s223 = sor.u32 %s221, %s222
      %p224 = scmp.eq.s32.totalorder %s223, 0
      %s226 = sadd.s32 %s225, 1
      %s227 = scalar_select %p224, %s225, %s226
      %p230 = pneg %p224
      %p231 = scmp.eq.s32.totalorder %s19, 3
      %p232 = por %p230, %p231
      %p233 = scmp.ne.s32.totalorder %s225, %s228
      %p234 = scmp.eq.s32.totalorder %s19, 0
      %p235 = por %p233, %p234
      %p236 = scmp.ne.s32.totalorder %s225, %s228
      %p237 = scmp.eq.s32.totalorder %s24, 3
      %p238 = por %p236, %p237
      %p239 = scmp.ne.s32.totalorder %s228, %s229
      %p240 = scmp.eq.s32.totalorder %s24, 0
      %p241 = por %p239, %p240
      %p242 = scmp.ne.s32.totalorder %s228, %s229
      %p243 = scmp.eq.s32.totalorder %s25, 3
      %p244 = por %p242, %p243
      %p246 = scmp.ne.s32.totalorder %s229, %s245
      %p247 = scmp.eq.s32.totalorder %s25, 0
      %p248 = por %p246, %p247
      %p249 = scmp.le.s32.totalorder 1, %s19
      %p250 = scmp.lt.s32.totalorder %s19, 5
      %p251 = pnand %p249, %p250
      %p252 = pneg %p251
      // Predicated region
      $region9: #{tpu_custom_call.1} parent=5 // pred_check
        _
      $region10: #{tpu_custom_call.1} parent=5 // pred_check_branch
        %254 = sbr.rel (%p251) target = $region12
      $region11: #{tpu_custom_call.1} parent=5 // pred_region
        %s255 = ssub.s32 %s19, 1
        // Predicated region
        $region13: #{tpu_custom_call.1} parent=11 // pred_check
          %p256 = pneg %p118
        $region14: #{tpu_custom_call.1} parent=11 // pred_check_branch
          %258 = sbr.rel (%p256) target = $region16
        $region15: #{tpu_custom_call.1} parent=11 // pred_region
          _
        $region16: #{tpu_custom_call.1} parent=11 // pred_fallthru
          _
        // Predicated region
        $region17: #{tpu_custom_call.1} parent=11 // pred_check
          %p259 = pneg %p139
        $region18: #{tpu_custom_call.1} parent=11 // pred_check_branch
          %261 = sbr.rel (%p259) target = $region20
        $region19: #{tpu_custom_call.1} parent=11 // pred_region
          _
        $region20: #{tpu_custom_call.1} parent=11 // pred_fallthru
          _
      $region12: #{tpu_custom_call.1} parent=5 // pred_fallthru
        _
      %p262 = scmp.lt.s32.totalorder %s19, 4
      // Predicated region
      $region21: #{tpu_custom_call.1} parent=5 // pred_check
        %p263 = pneg %p262
      $region22: #{tpu_custom_call.1} parent=5 // pred_check_branch
        %265 = sbr.rel (%p263) target = $region24
      $region23: #{tpu_custom_call.1} parent=5 // pred_region
        // Predicated region
        $region25: #{tpu_custom_call.1} parent=23 // pred_check
          %p266 = pneg %p57
        $region26: #{tpu_custom_call.1} parent=23 // pred_check_branch
          %268 = sbr.rel (%p266) target = $region28
        $region27: #{tpu_custom_call.1} parent=23 // pred_region
          %p269 = scmp.lt.s32.totalorder %s27, 0
          %s270 = scalar_select %p269, %s27, 0
          %p271 = scmp.lt.s32.totalorder %s26, 1
          %s272 = scalar_select %p271, %s26, 1
          %p273 = scmp.lt.s32.totalorder %s270, 0
          %s274 = scalar_select %p273, %s270, 0
          %s275 = smul.addr %s272, 4
          %s276 = sadd.s32 %s274, %s275
          %s277 = smul.addr %s276, 8
          %s278 = scalar_lea.vmem %s0, %s277
          %p279 = scmp.lt.s32.totalorder %s27, 0
          %s280 = scalar_select %p279, %s27, 0
        $region28: #{tpu_custom_call.1} parent=23 // pred_fallthru
          _
        // Predicated region
        $region29: #{tpu_custom_call.1} parent=23 // pred_check
          %p281 = pneg %p91
        $region30: #{tpu_custom_call.1} parent=23 // pred_check_branch
          %283 = sbr.rel (%p281) target = $region32
        $region31: #{tpu_custom_call.1} parent=23 // pred_region
          %s284 = ssub.s32 %s27, 1
          %p285 = scmp.gt.s32.totalorder %s284, 0
          %s286 = scalar_select %p285, %s284, 0
          %s287 = smul.u32 2, %s286
          %p288 = scmp.lt.s32.totalorder %s26, 1
          %s289 = scalar_select %p288, %s26, 1
          %p290 = scmp.lt.s32.totalorder %s287, 1
          %s291 = scalar_select %p290, %s287, 1
          %s292 = smul.addr %s289, 2
          %s293 = sadd.s32 %s291, %s292
          %s294 = smul.addr %s293, 8
          %s295 = scalar_lea.vmem %s1, %s294
          %s296 = ssub.s32 %s27, 1
          %p297 = scmp.gt.s32.totalorder %s296, 0
          %s298 = scalar_select %p297, %s296, 0
          %s299 = smul.u32 2, %s298
        $region32: #{tpu_custom_call.1} parent=23 // pred_fallthru
          _
      $region24: #{tpu_custom_call.1} parent=5 // pred_fallthru
        _
      %p300 = scmp.le.s32.totalorder 1, %s19
      %p301 = scmp.lt.s32.totalorder %s19, 5
      %p302 = pnand %p300, %p301
      %p303 = pneg %p302
      // Predicated region
      $region33: #{tpu_custom_call.1} parent=5 // pred_check
        _
      $region34: #{tpu_custom_call.1} parent=5 // pred_check_branch
        %305 = sbr.rel (%p302) target = $region36
      $region35: #{tpu_custom_call.1} parent=5 // pred_region
        %s306 = ssub.s32 %s19, 1
        %p307 = scmp.lt.s32.totalorder %s29, 0
        %s308 = scalar_select %p307, %s29, 0
        %p309 = scmp.lt.s32.totalorder %s28, 1
        %s310 = scalar_select %p309, %s28, 1
        %p311 = scmp.lt.s32.totalorder %s308, 0
        %s312 = scalar_select %p311, %s308, 0
        %s313 = smul.addr %s310, 4
        %s314 = sadd.s32 %s312, %s313
        %s315 = smul.addr %s314, 8
        %s316 = scalar_lea.vmem %s0, %s315
        %p317 = pneg %p63
        %p318 = pneg %p60
        %s319 = ssub.s32 %s29, 1
        %p320 = scmp.gt.s32.totalorder %s319, 0
        %s321 = scalar_select %p320, %s319, 0
        %s322 = smul.u32 2, %s321
        %p323 = scmp.lt.s32.totalorder %s28, 1
        %s324 = scalar_select %p323, %s28, 1
        %p325 = scmp.lt.s32.totalorder %s322, 1
        %s326 = scalar_select %p325, %s322, 1
        %s327 = smul.addr %s324, 2
        %s328 = sadd.s32 %s326, %s327
        %s329 = smul.addr %s328, 8
        %s330 = scalar_lea.vmem %s1, %s329
        %p331 = pneg %p97
        %p332 = pneg %p94
        %p333 = pneg %p118
        %p334 = pneg %p115
        %p335 = pneg %p139
        %p336 = pneg %p136
        %p337 = pneg %p173
        %p338 = pneg %p170
        %s339 = sand.u32 %s160, 1
        %s340 = scalar_lea.sflag [#allocation5], %s339
        %s341 = sand.u32 %s160, 1
        %s342 = smul.addr %s341, 8
        %s343 = scalar_lea.vmem [#allocation4], %s342
        %p344 = pneg %p207
        %p345 = pneg %p204
        %s346 = sand.u32 %s24, 1
        %s347 = scalar_lea.sflag [#allocation7], %s346
        %s348 = sand.u32 %s194, 1
        %s349 = smul.addr %s348, 8
        %s350 = scalar_lea.vmem [#allocation6], %s349
        %p351 = pneg %p241
        %p352 = pneg %p238
        %s353 = sand.u32 %s24, 1
        %s354 = scalar_lea.sflag [#allocation7], %s353
        %s355 = sand.u32 %s228, 1
        %s356 = smul.addr %s355, 8
        %s357 = scalar_lea.vmem [#allocation8], %s356
        %p358 = scmp.lt.s32.totalorder %s29, 0
        %s359 = scalar_select %p358, %s29, 0
        %p360 = scmp.lt.s32.totalorder %s28, 1
        %s361 = scalar_select %p360, %s28, 1
        %p362 = scmp.lt.s32.totalorder %s359, 0
        %s363 = scalar_select %p362, %s359, 0
        %s364 = smul.addr %s361, 4
        %s365 = sadd.s32 %s363, %s364
        %s366 = smul.addr %s365, 8
        %s367 = scalar_lea.vmem %s0, %s366
        %p368 = scmp.lt.s32.totalorder %s29, 0
        %s369 = scalar_select %p368, %s29, 0
        %s370 = ssub.s32 %s29, 1
        %p371 = scmp.gt.s32.totalorder %s370, 0
        %s372 = scalar_select %p371, %s370, 0
        %s373 = smul.u32 2, %s372
        %p374 = scmp.lt.s32.totalorder %s28, 1
        %s375 = scalar_select %p374, %s28, 1
        %p376 = scmp.lt.s32.totalorder %s373, 1
        %s377 = scalar_select %p376, %s373, 1
        %s378 = smul.addr %s375, 2
        %s379 = sadd.s32 %s377, %s378
        %s380 = smul.addr %s379, 8
        %s381 = scalar_lea.vmem %s1, %s380
        %s382 = ssub.s32 %s29, 1
        %p383 = scmp.gt.s32.totalorder %s382, 0
        %s384 = scalar_select %p383, %s382, 0
        %s385 = smul.u32 2, %s384
        %s386 = ssub.s32 %s29, 1
        %p387 = scmp.gt.s32.totalorder %s386, 0
        %s388 = scalar_select %p387, %s386, 0
        %s389 = smul.u32 2, %s388
        %s390 = ssub.s32 %s29, 1
        %p391 = scmp.gt.s32.totalorder %s390, 0
        %s392 = scalar_select %p391, %s390, 0
        %s393 = smul.u32 2, %s392
        %s394 = ssub.s32 %s29, 1
        %p395 = scmp.gt.s32.totalorder %s394, 0
        %s396 = scalar_select %p395, %s394, 0
        %s397 = smul.u32 2, %s396
        %v399 = vld [vmem:[%s367] sm:$0xff]
        %v400 = vld [vmem:[%s367 + $0x8] sm:$0xff]
        %v401 = vld [vmem:[%s367 + $0x10] sm:$0xff]
        %v402 = vld [vmem:[%s367 + $0x18] sm:$0xff]
        %403 = vxpose.xlu0.b32.start [1/16] %v399, 128
        %404 = vxpose.xlu0.b32.cont [2/16] %v400, 128
        %405 = vxpose.xlu0.b32.cont [3/16] %v401, 128
        %406 = vxpose.xlu0.b32.cont [4/16] %v402, 128
        %407 = vxpose.xlu0.b32.cont [5/16] 0.0, 128
        %408 = vxpose.xlu0.b32.cont [6/16] 0.0, 128
        %409 = vxpose.xlu0.b32.cont [7/16] 0.0, 128
        %410 = vxpose.xlu0.b32.cont [8/16] 0.0, 128
        %411 = vxpose.xlu0.b32.cont [9/16] 0.0, 128
        %412 = vxpose.xlu0.b32.cont [10/16] 0.0, 128
        %413 = vxpose.xlu0.b32.cont [11/16] 0.0, 128
        %414 = vxpose.xlu0.b32.cont [12/16] 0.0, 128
        %415 = vxpose.xlu0.b32.cont [13/16] 0.0, 128
        %416 = vxpose.xlu0.b32.cont [14/16] 0.0, 128
        %417 = vxpose.xlu0.b32.cont [15/16] 0.0, 128
        %418 = vxpose.xlu0.b32.end [16/16] 0.0, 128
        %v419 = vpop.trf.xlu0
        %v420 = vpop.trf.xlu0
        %v421 = vpop.trf.xlu0
        %v422 = vpop.trf.xlu0
        %v423 = vpop.trf.xlu0
        %v424 = vpop.trf.xlu0
        %v425 = vpop.trf.xlu0
        %v426 = vpop.trf.xlu0
        %v427 = vpop.trf.xlu0
        %v428 = vpop.trf.xlu0
        %v429 = vpop.trf.xlu0
        %v430 = vpop.trf.xlu0
        %v431 = vpop.trf.xlu0
        %v432 = vpop.trf.xlu0
        %v433 = vpop.trf.xlu0
        %v434 = vpop.trf.xlu0
        %p435 = scmp.gt.s32.totalorder %s29, 0
        // Predicated region
        $region37: #{tpu_custom_call.1} parent=35 // pred_check
          %p436 = pneg %p435
        $region38: #{tpu_custom_call.1} parent=35 // pred_check_branch
          %438 = sbr.rel (%p436) target = $region40
        $region39: #{tpu_custom_call.1} parent=35 // pred_region
          %v439 = vld [vmem:[%s2] sm:$0xff]
          %v440 = vld [vmem:[%s2 + $0x8] sm:$0xff]
          %v441 = vld [vmem:[%s2 + $0x10] sm:$0x3]
          %v442 = vld [vmem:[#allocation2] sm:$0xff]
          %v443 = vld [vmem:[#allocation2 + $0x8] sm:$0xff]
          %v444 = vld [vmem:[#allocation3] sm:$0x1]
          %p445 = scmp.eq.s32.totalorder %s29, 1
          %s446 = scalar_select %p445, 1, 0
          %v447 = vstv %s446
          %vm448 = vcmp.eq.s32.totalorder %v447, 1
          %v449 = vsel %vm448, 0.0, %v419
          %v450 = vld [vmem:[%s381] sm:$0xff]
          %v451 = vld [vmem:[%s381 + $0x8] sm:$0xff]
          %vm454 = vcmask 1040384
          %v455 = vrot.slane %v442, 7
          %v456 = vrot.slane %v443, 7
          %v457 = vsel %vm454, %v455, %v456
          %v462 = vrot.slane %v449, 7
          %v464 = vsel %vm454, %v444, %v455
          %v465 = vsel %vm454, %v456, %v462
          %v466 = vlaneseq
          %v467 = vshrl.u32 %v466, 7
          %v468 = vsub.s32 0, %v467
          %v469 = vrot.slane %v439, %v468
          %v470 = vmul.f32 %v469, %v464
          %v471 = vmul.f32 %v469, %v457
          %v472 = vlaneseq
          %v473 = vshrl.u32 %v472, 7
          %v474 = vsub.s32 1, %v473
          %v475 = vrot.slane %v439, %v474
          %v476 = vmul.f32 %v475, %v464
          %v477 = vmul.f32 %v475, %v457
          %v478 = vmul.f32 %v475, %v465
          %vm482 = vcmask 1046528
          %v483 = vrot.slane %v476, 1
          %v484 = vrot.slane %v477, 1
          %v485 = vsel %vm482, %v483, %v484
          %v486 = vrot.slane %v478, 1
          %v487 = vsel %vm482, %v484, %v486
          %v490 = vadd.f32 %v470, %v485
          %v491 = vadd.f32 %v471, %v487
          %v492 = vlaneseq
          %v493 = vshrl.u32 %v492, 7
          %v494 = vsub.s32 2, %v493
          %v495 = vrot.slane %v439, %v494
          %v496 = vmul.f32 %v495, %v464
          %v497 = vmul.f32 %v495, %v457
          %v498 = vmul.f32 %v495, %v465
          %vm502 = vcmask 1045504
          %v503 = vrot.slane %v496, 2
          %v504 = vrot.slane %v497, 2
          %v505 = vsel %vm502, %v503, %v504
          %v506 = vrot.slane %v498, 2
          %v507 = vsel %vm502, %v504, %v506
          %v510 = vadd.f32 %v490, %v505
          %v511 = vadd.f32 %v491, %v507
          %513 = vset.pattern.permute.xlu0 0
          %514 = vperm.xlu0 %513, %v450
          %v515 = vpop.permute.xlu0 %514
          %518 = vset.pattern.permute.xlu0 0
          %519 = vperm.xlu0 %518, %v451
          %v520 = vpop.permute.xlu0 %519
          %v522 = vmul.f32 %v510, %v515
          %v523 = vmul.f32 %v511, %v520
          %vm524 = vcmask 261120
          %v525 = vsel %vm524, %v522, 0.0
          %526 = vadd.xlane.f32.xlu0 %v525
          %v527 = vpop.xlane.xlu0 %526
          %v528 = vsel %vm524, %v523, 0.0
          %529 = vadd.xlane.f32.xlu0 %v528
          %v530 = vpop.xlane.xlu0 %529
          %v531 = vrcp.pop 32.0
          %v532 = vmul.f32 %v527, %v531
          %v533 = vmul.f32 %v530, %v531
          %v534 = vsub.f32 %v522, %v532
          %v535 = vsub.f32 %v523, %v533
          %v536 = vmul.f32 %v534, %v534
          %v537 = vmul.f32 %v535, %v535
          %v538 = vsel %vm524, %v536, 0.0
          %539 = vadd.xlane.f32.xlu0 %v538
          %v540 = vpop.xlane.xlu0 %539
          %v541 = vsel %vm524, %v537, 0.0
          %542 = vadd.xlane.f32.xlu0 %v541
          %v543 = vpop.xlane.xlu0 %542
          %v544 = vmul.f32 %v540, %v531
          %v545 = vmul.f32 %v543, %v531
          %v546 = vadd.f32 %v544, 1e-05
          %v547 = vadd.f32 %v545, 1e-05
          %v548 = vrsqrt.pop %v546
          %v549 = vrsqrt.pop %v547
          %v550 = vmul.f32 %v534, %v548
          %v551 = vmul.f32 %v535, %v549
          %v552 = vlaneseq
          %v553 = vshrl.u32 %v552, 7
          %v554 = vsub.s32 1, %v553
          %v555 = vrot.slane %v440, %v554
          %v556 = vmul.f32 %v550, %v555
          %v557 = vmul.f32 %v551, %v555
          %v558 = vlaneseq
          %v559 = vshrl.u32 %v558, 7
          %v560 = vsub.s32 2, %v559
          %v561 = vrot.slane %v440, %v560
          %v562 = vadd.f32 %v556, %v561
          %v563 = vadd.f32 %v557, %v561
          %v564 = vpack.c.bf16 %v563, %v562
          %v565 = vld [vmem:[%s3] sm:$0xf]
          %v566 = vld [vmem:[%s3 + $0x4] sm:$0xf]
          %v567 = vld [vmem:[%s3 + $0x8] sm:$0xf]
          %v568 = vld [vmem:[%s3 + $0xc] sm:$0xf]
          %v569 = vlaneseq
          %v570 = vshrl.u32 %v569, 7
          %v571 = vsub.s32 7, %v570
          %v572 = vrot.slane %v440, %v571
          %v577 = vunpack.c.l.b16 %v565
          %v578 = vunpack.c.l.b16 %v566
          %v579 = vunpack.c.l.b16 %v567
          %v580 = vunpack.c.l.b16 %v568
          %v581 = vpack.c.b16 %v578, %v577
          %v582 = vpack.c.b16 %v580, %v579
          %v586 = vsel %vm524, %v564, 0
          %588 = vmatprep.subr.bf16.mxu0 0
          %589 = vmatpush1.bf16.msra.mxu0 %v581
          %590 = vmatprep.subr.bf16.mxu0 0
          %591 = vmatpush1.bf16.msra.mxu0 %v582
          %592 = vmatprep.subr.bf16.mxu0 0
          %593 = vmatpush1.bf16.msra.mxu0 0
          %594 = vmatprep.subr.bf16.mxu0 0
          %595 = vmatpush1.bf16.msra.mxu0 0
          %596 = vmatprep.subr.bf16.mxu0 0
          %597 = vmatpush1.bf16.msra.mxu0 0
          %598 = vmatprep.subr.bf16.mxu0 0
          %599 = vmatpush1.bf16.msra.mxu0 0
          %600 = vmatprep.subr.bf16.mxu0 0
          %601 = vmatpush1.bf16.msra.mxu0 0
          %602 = vmatprep.subr.bf16.mxu0 0
          %603 = vmatpush1.bf16.msra.mxu0 0
          %604 = vmatprep.subr.bf16.mxu0 0
          %605 = vmatpush1.bf16.msra.mxu0 0
          %606 = vmatprep.subr.bf16.mxu0 0
          %607 = vmatpush1.bf16.msra.mxu0 0
          %608 = vmatprep.subr.bf16.mxu0 0
          %609 = vmatpush1.bf16.msra.mxu0 0
          %610 = vmatprep.subr.bf16.mxu0 0
          %611 = vmatpush1.bf16.msra.mxu0 0
          %612 = vmatprep.subr.bf16.mxu0 0
          %613 = vmatpush1.bf16.msra.mxu0 0
          %614 = vmatprep.subr.bf16.mxu0 0
          %615 = vmatpush1.bf16.msra.mxu0 0
          %616 = vmatprep.subr.bf16.mxu0 0
          %617 = vmatpush1.bf16.msra.mxu0 0
          %618 = vmatprep.subr.bf16.mxu0 0
          %619 = vmatpush1.bf16.msra.mxu0 0
          %620 = vmatprep.mubr.bf16.mxu0 0
          %621 = vmatmul.mubr.bf16.gmra.mrb[0].mxu0 %v586
          %v622 = vpop.f32.mrb[0].mxu0
          %v623 = vadd.f32 %v572, %v622
          %v624 = vpop.f32.mrb[0].mxu0
          %v625 = vpop.f32.mrb[0].mxu0
          %v626 = vadd.f32 %v572, %v625
          %v627 = vpop.f32.mrb[0].mxu0
          %628 = vdwg.mxu0
          %v629 = vpack.c.bf16 %v626, %v623
          %v631 = vunpack.c.l.b16 %v629
          %v632 = vunpack.c.h.b16 %v629
          %v633 = vpack.c.b16 %v631, %v631
          %v634 = vpack.c.b16 %v632, %v632
          %vm637 = vcmask 257024
          %638 = vst.msk [vmem:[%s343] sm:$0xf] %vm637, %v633
          %639 = vst.msk [vmem:[%s343 + $0x4] sm:$0xf] %vm637, %v634
          %v640 = vlaneseq
          %v641 = vshrl.u32 %v640, 7
          %v642 = vsub.s32 3, %v641
          %v643 = vrot.slane %v439, %v642
          %v644 = vmul.f32 %v643, %v464
          %v645 = vmul.f32 %v643, %v457
          %v646 = vlaneseq
          %v647 = vshrl.u32 %v646, 7
          %v648 = vsub.s32 4, %v647
          %v649 = vrot.slane %v439, %v648
          %v650 = vmul.f32 %v649, %v464
          %v651 = vmul.f32 %v649, %v457
          %v652 = vmul.f32 %v649, %v465
          %v656 = vrot.slane %v650, 1
          %v657 = vrot.slane %v651, 1
          %v658 = vsel %vm482, %v656, %v657
          %v659 = vrot.slane %v652, 1
          %v660 = vsel %vm482, %v657, %v659
          %v663 = vadd.f32 %v644, %v658
          %v664 = vadd.f32 %v645, %v660
          %v665 = vlaneseq
          %v666 = vshrl.u32 %v665, 7
          %v667 = vsub.s32 5, %v666
          %v668 = vrot.slane %v439, %v667
          %v669 = vmul.f32 %v668, %v464
          %v670 = vmul.f32 %v668, %v457
          %v671 = vmul.f32 %v668, %v465
          %v675 = vrot.slane %v669, 2
          %v676 = vrot.slane %v670, 2
          %v677 = vsel %vm502, %v675, %v676
          %v678 = vrot.slane %v671, 2
          %v679 = vsel %vm502, %v676, %v678
          %v682 = vadd.f32 %v663, %v677
          %v683 = vadd.f32 %v664, %v679
          %v684 = vmul.f32 %v682, %v515
          %v685 = vmul.f32 %v683, %v520
          %v686 = vsel %vm524, %v684, 0.0
          %687 = vadd.xlane.f32.xlu0 %v686
          %v688 = vpop.xlane.xlu0 %687
          %v689 = vsel %vm524, %v685, 0.0
          %690 = vadd.xlane.f32.xlu0 %v689
          %v691 = vpop.xlane.xlu0 %690
          %v692 = vmul.f32 %v688, %v531
          %v693 = vmul.f32 %v691, %v531
          %v694 = vsub.f32 %v684, %v692
          %v695 = vsub.f32 %v685, %v693
          %v696 = vmul.f32 %v694, %v694
          %v697 = vmul.f32 %v695, %v695
          %v698 = vsel %vm524, %v696, 0.0
          %699 = vadd.xlane.f32.xlu0 %v698
          %v700 = vpop.xlane.xlu0 %699
          %v701 = vsel %vm524, %v697, 0.0
          %702 = vadd.xlane.f32.xlu0 %v701
          %v703 = vpop.xlane.xlu0 %702
          %v704 = vmul.f32 %v700, %v531
          %v705 = vmul.f32 %v703, %v531
          %v706 = vadd.f32 %v704, 1e-05
          %v707 = vadd.f32 %v705, 1e-05
          %v708 = vrsqrt.pop %v706
          %v709 = vrsqrt.pop %v707
          %v710 = vmul.f32 %v694, %v708
          %v711 = vmul.f32 %v695, %v709
          %v712 = vlaneseq
          %v713 = vshrl.u32 %v712, 7
          %v714 = vsub.s32 3, %v713
          %v715 = vrot.slane %v440, %v714
          %v716 = vmul.f32 %v710, %v715
          %v717 = vmul.f32 %v711, %v715
          %v718 = vlaneseq
          %v719 = vshrl.u32 %v718, 7
          %v720 = vsub.s32 4, %v719
          %v721 = vrot.slane %v440, %v720
          %v722 = vadd.f32 %v716, %v721
          %v723 = vadd.f32 %v717, %v721
          %v724 = vpack.c.bf16 %v723, %v722
          %s725 = scalar_lea.vmem %s3, 16
          %v726 = vld [vmem:[%s725] sm:$0xf]
          %v727 = vld [vmem:[%s725 + $0x4] sm:$0xf]
          %v728 = vld [vmem:[%s725 + $0x8] sm:$0xf]
          %v729 = vld [vmem:[%s725 + $0xc] sm:$0xf]
          %v730 = vlaneseq
          %v731 = vshrl.u32 %v730, 7
          %v732 = vsub.s32 0, %v731
          %v733 = vrot.slane %v441, %v732
          %v738 = vunpack.c.l.b16 %v726
          %v739 = vunpack.c.l.b16 %v727
          %v740 = vunpack.c.l.b16 %v728
          %v741 = vunpack.c.l.b16 %v729
          %v742 = vpack.c.b16 %v739, %v738
          %v743 = vpack.c.b16 %v741, %v740
          %v747 = vsel %vm524, %v724, 0
          %749 = vmatprep.subr.bf16.mxu0 0
          %750 = vmatpush1.bf16.msra.mxu0 %v742
          %751 = vmatprep.subr.bf16.mxu0 0
          %752 = vmatpush1.bf16.msra.mxu0 %v743
          %753 = vmatprep.subr.bf16.mxu0 0
          %754 = vmatpush1.bf16.msra.mxu0 0
          %755 = vmatprep.subr.bf16.mxu0 0
          %756 = vmatpush1.bf16.msra.mxu0 0
          %757 = vmatprep.subr.bf16.mxu0 0
          %758 = vmatpush1.bf16.msra.mxu0 0
          %759 = vmatprep.subr.bf16.mxu0 0
          %760 = vmatpush1.bf16.msra.mxu0 0
          %761 = vmatprep.subr.bf16.mxu0 0
          %762 = vmatpush1.bf16.msra.mxu0 0
          %763 = vmatprep.subr.bf16.mxu0 0
          %764 = vmatpush1.bf16.msra.mxu0 0
          %765 = vmatprep.subr.bf16.mxu0 0
          %766 = vmatpush1.bf16.msra.mxu0 0
          %767 = vmatprep.subr.bf16.mxu0 0
          %768 = vmatpush1.bf16.msra.mxu0 0
          %769 = vmatprep.subr.bf16.mxu0 0
          %770 = vmatpush1.bf16.msra.mxu0 0
          %771 = vmatprep.subr.bf16.mxu0 0
          %772 = vmatpush1.bf16.msra.mxu0 0
          %773 = vmatprep.subr.bf16.mxu0 0
          %774 = vmatpush1.bf16.msra.mxu0 0
          %775 = vmatprep.subr.bf16.mxu0 0
          %776 = vmatpush1.bf16.msra.mxu0 0
          %777 = vmatprep.subr.bf16.mxu0 0
          %778 = vmatpush1.bf16.msra.mxu0 0
          %779 = vmatprep.subr.bf16.mxu0 0
          %780 = vmatpush1.bf16.msra.mxu0 0
          %781 = vmatprep.mubr.bf16.mxu0 0
          %782 = vmatmul.mubr.bf16.gmra.mrb[0].mxu0 %v747
          %v783 = vpop.f32.mrb[0].mxu0
          %v784 = vadd.f32 %v733, %v783
          %v785 = vpop.f32.mrb[0].mxu0
          %v786 = vpop.f32.mrb[0].mxu0
          %v787 = vadd.f32 %v733, %v786
          %v788 = vpop.f32.mrb[0].mxu0
          %789 = vdwg.mxu0
          %v790 = vpack.c.bf16 %v787, %v784
          %v792 = vunpack.c.l.b16 %v790
          %v793 = vunpack.c.h.b16 %v790
          %v794 = vpack.c.b16 %v792, %v792
          %v795 = vpack.c.b16 %v793, %v793
          %798 = vst.msk [vmem:[%s350] sm:$0xf] %vm637, %v794
          %799 = vst.msk [vmem:[%s350 + $0x4] sm:$0xf] %vm637, %v795
          %v800 = vlaneseq
          %v801 = vshrl.u32 %v800, 7
          %v802 = vsub.s32 6, %v801
          %v803 = vrot.slane %v439, %v802
          %v804 = vmul.f32 %v803, %v464
          %v805 = vmul.f32 %v803, %v457
          %v806 = vlaneseq
          %v807 = vshrl.u32 %v806, 7
          %v808 = vsub.s32 7, %v807
          %v809 = vrot.slane %v439, %v808
          %v810 = vmul.f32 %v809, %v464
          %v811 = vmul.f32 %v809, %v457
          %v812 = vmul.f32 %v809, %v465
          %v816 = vrot.slane %v810, 1
          %v817 = vrot.slane %v811, 1
          %v818 = vsel %vm482, %v816, %v817
          %v819 = vrot.slane %v812, 1
          %v820 = vsel %vm482, %v817, %v819
          %v823 = vadd.f32 %v804, %v818
          %v824 = vadd.f32 %v805, %v820
          %v825 = vlaneseq
          %v826 = vshrl.u32 %v825, 7
          %v827 = vsub.s32 0, %v826
          %v828 = vrot.slane %v440, %v827
          %v829 = vmul.f32 %v828, %v464
          %v830 = vmul.f32 %v828, %v457
          %v831 = vmul.f32 %v828, %v465
          %v835 = vrot.slane %v829, 2
          %v836 = vrot.slane %v830, 2
          %v837 = vsel %vm502, %v835, %v836
          %v838 = vrot.slane %v831, 2
          %v839 = vsel %vm502, %v836, %v838
          %v842 = vadd.f32 %v823, %v837
          %v843 = vadd.f32 %v824, %v839
          %v844 = vmul.f32 %v842, %v515
          %v845 = vmul.f32 %v843, %v520
          %v846 = vsel %vm524, %v844, 0.0
          %847 = vadd.xlane.f32.xlu0 %v846
          %v848 = vpop.xlane.xlu0 %847
          %v849 = vsel %vm524, %v845, 0.0
          %850 = vadd.xlane.f32.xlu0 %v849
          %v851 = vpop.xlane.xlu0 %850
          %v852 = vmul.f32 %v848, %v531
          %v853 = vmul.f32 %v851, %v531
          %v854 = vsub.f32 %v844, %v852
          %v855 = vsub.f32 %v845, %v853
          %v856 = vmul.f32 %v854, %v854
          %v857 = vmul.f32 %v855, %v855
          %v858 = vsel %vm524, %v856, 0.0
          %859 = vadd.xlane.f32.xlu0 %v858
          %v860 = vpop.xlane.xlu0 %859
          %v861 = vsel %vm524, %v857, 0.0
          %862 = vadd.xlane.f32.xlu0 %v861
          %v863 = vpop.xlane.xlu0 %862
          %v864 = vmul.f32 %v860, %v531
          %v865 = vmul.f32 %v863, %v531
          %v866 = vadd.f32 %v864, 1e-05
          %v867 = vadd.f32 %v865, 1e-05
          %v868 = vrsqrt.pop %v866
          %v869 = vrsqrt.pop %v867
          %v870 = vmul.f32 %v854, %v868
          %v871 = vmul.f32 %v855, %v869
          %v872 = vlaneseq
          %v873 = vshrl.u32 %v872, 7
          %v874 = vsub.s32 5, %v873
          %v875 = vrot.slane %v440, %v874
          %v876 = vmul.f32 %v870, %v875
          %v877 = vmul.f32 %v871, %v875
          %v878 = vlaneseq
          %v879 = vshrl.u32 %v878, 7
          %v880 = vsub.s32 6, %v879
          %v881 = vrot.slane %v440, %v880
          %v882 = vadd.f32 %v876, %v881
          %v883 = vadd.f32 %v877, %v881
          %v884 = vpack.c.bf16 %v883, %v882
          %s885 = scalar_lea.vmem %s3, 32
          %v886 = vld [vmem:[%s885] sm:$0xf]
          %v887 = vld [vmem:[%s885 + $0x4] sm:$0xf]
          %v888 = vld [vmem:[%s885 + $0x8] sm:$0xf]
          %v889 = vld [vmem:[%s885 + $0xc] sm:$0xf]
          %v890 = vlaneseq
          %v891 = vshrl.u32 %v890, 7
          %v892 = vsub.s32 1, %v891
          %v893 = vrot.slane %v441, %v892
          %v898 = vunpack.c.l.b16 %v886
          %v899 = vunpack.c.l.b16 %v887
          %v900 = vunpack.c.l.b16 %v888
          %v901 = vunpack.c.l.b16 %v889
          %v902 = vpack.c.b16 %v899, %v898
          %v903 = vpack.c.b16 %v901, %v900
          %v907 = vsel %vm524, %v884, 0
          %909 = vmatprep.subr.bf16.mxu0 0
          %910 = vmatpush1.bf16.msra.mxu0 %v902
          %911 = vmatprep.subr.bf16.mxu0 0
          %912 = vmatpush1.bf16.msra.mxu0 %v903
          %913 = vmatprep.subr.bf16.mxu0 0
          %914 = vmatpush1.bf16.msra.mxu0 0
          %915 = vmatprep.subr.bf16.mxu0 0
          %916 = vmatpush1.bf16.msra.mxu0 0
          %917 = vmatprep.subr.bf16.mxu0 0
          %918 = vmatpush1.bf16.msra.mxu0 0
          %919 = vmatprep.subr.bf16.mxu0 0
          %920 = vmatpush1.bf16.msra.mxu0 0
          %921 = vmatprep.subr.bf16.mxu0 0
          %922 = vmatpush1.bf16.msra.mxu0 0
          %923 = vmatprep.subr.bf16.mxu0 0
          %924 = vmatpush1.bf16.msra.mxu0 0
          %925 = vmatprep.subr.bf16.mxu0 0
          %926 = vmatpush1.bf16.msra.mxu0 0
          %927 = vmatprep.subr.bf16.mxu0 0
          %928 = vmatpush1.bf16.msra.mxu0 0
          %929 = vmatprep.subr.bf16.mxu0 0
          %930 = vmatpush1.bf16.msra.mxu0 0
          %931 = vmatprep.subr.bf16.mxu0 0
          %932 = vmatpush1.bf16.msra.mxu0 0
          %933 = vmatprep.subr.bf16.mxu0 0
          %934 = vmatpush1.bf16.msra.mxu0 0
          %935 = vmatprep.subr.bf16.mxu0 0
          %936 = vmatpush1.bf16.msra.mxu0 0
          %937 = vmatprep.subr.bf16.mxu0 0
          %938 = vmatpush1.bf16.msra.mxu0 0
          %939 = vmatprep.subr.bf16.mxu0 0
          %940 = vmatpush1.bf16.msra.mxu0 0
          %941 = vmatprep.mubr.bf16.mxu0 0
          %942 = vmatmul.mubr.bf16.gmra.mrb[0].mxu0 %v907
          %v943 = vpop.f32.mrb[0].mxu0
          %v944 = vadd.f32 %v893, %v943
          %v945 = vpop.f32.mrb[0].mxu0
          %v946 = vpop.f32.mrb[0].mxu0
          %v947 = vadd.f32 %v893, %v946
          %v948 = vpop.f32.mrb[0].mxu0
          %949 = vdwg.mxu0
          %v950 = vpack.c.bf16 %v947, %v944
          %v952 = vunpack.c.l.b16 %v950
          %v953 = vunpack.c.h.b16 %v950
          %v954 = vpack.c.b16 %v952, %v952
          %v955 = vpack.c.b16 %v953, %v953
          %958 = vst.msk [vmem:[%s357] sm:$0xf] %vm637, %v954
          %959 = vst.msk [vmem:[%s357 + $0x4] sm:$0xf] %vm637, %v955
        $region40: #{tpu_custom_call.1} parent=35 // pred_fallthru
          _
        %p960 = scmp.eq.s32.totalorder %s29, 0
        %v961 = vld [vmem:[#allocation2 + $0xf] sm:$0x1]
        %s962 = scalar_select %p960, 1, 0
        %v963 = vstv %s962
        %vm964 = vcmp.eq.s32.totalorder %v963, 1
        %v965 = vsel %vm964, 0.0, %v961
        %vm966 = vcmask 253952
        %967 = vst.msk [vmem:[#allocation3] sm:$0x1] %vm966, %v965
        %vm968 = vcmask 261120
        %969 = vst.msk [vmem:[#allocation2] sm:$0xff] %vm968, %v419
        %970 = vst.msk [vmem:[#allocation2 + $0x8] sm:$0xff] %vm968, %v420
        %s971 = sand.u32 %s160, 1
        %s972 = scalar_lea.sflag [#allocation5], %s971
        %s973 = sand.u32 %s160, 1
        %s974 = smul.addr %s973, 8
        %s975 = scalar_lea.vmem [#allocation4], %s974
        %s976 = sand.u32 %s24, 1
        %s977 = scalar_lea.sflag [#allocation7], %s976
        %s978 = sand.u32 %s194, 1
        %s979 = smul.addr %s978, 8
        %s980 = scalar_lea.vmem [#allocation6], %s979
        %s981 = sand.u32 %s24, 1
        %s982 = scalar_lea.sflag [#allocation7], %s981
        %s983 = sand.u32 %s228, 1
        %s984 = smul.addr %s983, 8
        %s985 = scalar_lea.vmem [#allocation8], %s984
        // Predicated region
        $region41: #{tpu_custom_call.1} parent=35 // pred_check
          %p986 = pneg %p170
        $region42: #{tpu_custom_call.1} parent=35 // pred_check_branch
          %988 = sbr.rel (%p986) target = $region44
        $region43: #{tpu_custom_call.1} parent=35 // pred_region
          %s989 = ssub.s32 %s29, 1
          %p990 = scmp.gt.s32.totalorder %s989, 0
          %s991 = scalar_select %p990, %s989, 0
          %s992 = smul.u32 2, %s991
          %s994 = ssub.s32 128, 128
          %995 = vsyncadd %s972, %s994
          %s996 = smul.addr %s28, 2
          %s997 = sadd.s32 %s992, %s996
          %s998 = smul.addr %s997, 64
          %s999 = scalar_lea.hbm %s4, %s998
          %s1000 = sshll.u32 %s975, 4
          %s1001 = int_to_ptr.vmem [resolvable:$true] %s1000
          %1006 = dma.vmem_to_hbm [thread:$0]  %s1001, 128, %s999, %s972, 64, 64, 4
        $region44: #{tpu_custom_call.1} parent=35 // pred_fallthru
          _
        // Predicated region
        $region45: #{tpu_custom_call.1} parent=35 // pred_check
          %p1007 = pneg %p204
        $region46: #{tpu_custom_call.1} parent=35 // pred_check_branch
          %1009 = sbr.rel (%p1007) target = $region48
        $region47: #{tpu_custom_call.1} parent=35 // pred_region
          %s1010 = ssub.s32 %s29, 1
          %p1011 = scmp.gt.s32.totalorder %s1010, 0
          %s1012 = scalar_select %p1011, %s1010, 0
          %s1013 = smul.u32 2, %s1012
          %s1015 = ssub.s32 128, 128
          %1016 = vsyncadd %s977, %s1015
          %s1017 = smul.addr %s28, 2
          %s1018 = sadd.s32 %s1013, %s1017
          %s1019 = smul.addr %s1018, 64
          %s1020 = scalar_lea.hbm %s5, %s1019
          %s1021 = sshll.u32 %s980, 4
          %s1022 = int_to_ptr.vmem [resolvable:$true] %s1021
          %1027 = dma.vmem_to_hbm [thread:$0]  %s1022, 128, %s1020, %s977, 64, 64, 4
        $region48: #{tpu_custom_call.1} parent=35 // pred_fallthru
          _
        // Predicated region
        $region49: #{tpu_custom_call.1} parent=35 // pred_check
          %p1028 = pneg %p238
        $region50: #{tpu_custom_call.1} parent=35 // pred_check_branch
          %1030 = sbr.rel (%p1028) target = $region52
        $region51: #{tpu_custom_call.1} parent=35 // pred_region
          %s1031 = ssub.s32 %s29, 1
          %p1032 = scmp.gt.s32.totalorder %s1031, 0
          %s1033 = scalar_select %p1032, %s1031, 0
          %s1034 = smul.u32 2, %s1033
          %s1036 = ssub.s32 128, 128
          %1037 = vsyncadd %s982, %s1036
          %s1038 = smul.addr %s28, 2
          %s1039 = sadd.s32 %s1034, %s1038
          %s1040 = smul.addr %s1039, 64
          %s1041 = scalar_lea.hbm %s6, %s1040
          %s1042 = sshll.u32 %s985, 4
          %s1043 = int_to_ptr.vmem [resolvable:$true] %s1042
          %1048 = dma.vmem_to_hbm [thread:$0]  %s1043, 128, %s1041, %s982, 64, 64, 4
        $region52: #{tpu_custom_call.1} parent=35 // pred_fallthru
          _
      $region36: #{tpu_custom_call.1} parent=5 // pred_fallthru
        _
      %p1049 = scmp.le.s32.totalorder 2, %s19
      // Predicated region
      $region53: #{tpu_custom_call.1} parent=5 // pred_check
        %p1050 = pneg %p1049
      $region54: #{tpu_custom_call.1} parent=5 // pred_check_branch
        %1052 = sbr.rel (%p1050) target = $region56
      $region55: #{tpu_custom_call.1} parent=5 // pred_region
        %s1053 = ssub.s32 %s19, 2
        // Predicated region
        $region57: #{tpu_custom_call.1} parent=55 // pred_check
          %p1054 = pneg %p176
        $region58: #{tpu_custom_call.1} parent=55 // pred_check_branch
          %1056 = sbr.rel (%p1054) target = $region60
        $region59: #{tpu_custom_call.1} parent=55 // pred_region
          %s1057 = sand.u32 %s161, 1
          %s1058 = scalar_lea.sflag [#allocation5], %s1057
          %s1059 = sand.u32 %s161, 1
          %s1060 = smul.addr %s1059, 8
          %s1061 = scalar_lea.vmem [#allocation4], %s1060
          %1062 = dma.done %s1058, 128
        $region60: #{tpu_custom_call.1} parent=55 // pred_fallthru
          _
        // Predicated region
        $region61: #{tpu_custom_call.1} parent=55 // pred_check
          %p1063 = pneg %p210
        $region62: #{tpu_custom_call.1} parent=55 // pred_check_branch
          %1065 = sbr.rel (%p1063) target = $region64
        $region63: #{tpu_custom_call.1} parent=55 // pred_region
          %s1066 = sand.u32 %s25, 1
          %s1067 = scalar_lea.sflag [#allocation7], %s1066
          %s1068 = sand.u32 %s195, 1
          %s1069 = smul.addr %s1068, 8
          %s1070 = scalar_lea.vmem [#allocation6], %s1069
          %1071 = dma.done %s1067, 128
        $region64: #{tpu_custom_call.1} parent=55 // pred_fallthru
          _
        // Predicated region
        $region65: #{tpu_custom_call.1} parent=55 // pred_check
          %p1072 = pneg %p244
        $region66: #{tpu_custom_call.1} parent=55 // pred_check_branch
          %1074 = sbr.rel (%p1072) target = $region68
        $region67: #{tpu_custom_call.1} parent=55 // pred_region
          %s1075 = sand.u32 %s25, 1
          %s1076 = scalar_lea.sflag [#allocation7], %s1075
          %s1077 = sand.u32 %s229, 1
          %s1078 = smul.addr %s1077, 8
          %s1079 = scalar_lea.vmem [#allocation8], %s1078
          %1080 = dma.done %s1076, 128
        $region68: #{tpu_custom_call.1} parent=55 // pred_fallthru
          _
      $region56: #{tpu_custom_call.1} parent=5 // pred_fallthru
        _
    $region6: #{tpu_custom_call.1} parent=1 // loop_footer
      %s23 = sadd.s32 1, %s19
    $region7: #{tpu_custom_call.1} parent=1 // loop_footer_branch
      %18 = sbr.rel target = $region3
    $region8: #{tpu_custom_call.1} parent=1 // loop_exit
      _
    %1081 = vsyncpa [#allocation5], 1
    %s1082 = scalar_lea.sflag [#allocation5], 1
    %1083 = vsyncpa %s1082, 1
    %1084 = vsyncpa [#allocation7], 1
    %s1085 = scalar_lea.sflag [#allocation7], 1
    %1086 = vsyncpa %s1085, 1

</llo_original>
